<compile_context>
chip_gen: v7x
topology: tpu7x:2x2x1
jax: 0.10.0
libtpu: 0.0.40
codegen_flags: <defaults>
</compile_context>

<pallas_src>
import math

import numpy as np
import jax
import jax.numpy as jnp
from jax.experimental import pallas as pl
from jax.experimental.pallas import tpu as pltpu

# ----- module-consistent small sizes -----
N = 8            # rows per instance (the "-1" dim of .view(-1, n_heads, d_k))
D = 32           # input_dim of EncoderLayertwo
H = 4            # n_heads
DK = D // H      # d_k = d_v
F = D // N       # row-folding factor of the context.transpose(1,2).reshape scramble
FD = F * D
EPS = 1e-5       # torch.nn.LayerNorm default eps

P = 2            # instance-pairs packed per grid step (lane groups = 2P)
G = 2 * P        # column groups per step: group g = 2*pair_in_step + branch
GD = G * D       # 128 lanes -> lane-dense blocks
GHN = G * H * N  # 128 score rows

BR = [g % 2 for g in range(G)]   # branch of group g
QG = [g ^ 1 for g in range(G)]   # query group feeding output group g (pair partner)

# row offsets inside the consolidated 128-lane "wide" parameter slab
OFF_WL1 = 0
OFF_MASK = GD
OFF_VEC = GD + GHN
WIDE_ROWS = ((GD + GHN + 5 + 7) // 8) * 8


# ---------------------------------------------------------------------------
# Fused kernel: one grid step = P instance-pairs (both branches of each pair)
# ---------------------------------------------------------------------------
def _fused_kernel(x_ref, wqkv_ref, wfc_ref, wide_ref, small_ref, out_ref):
    f32 = jnp.float32
    Xcat = x_ref[0]                                        # (N, GD): [X|X1|X|X1] per pair

    wl1_bd = wide_ref[OFF_WL1:OFF_WL1 + GD, :]             # (GD, GD) block-diag l1 weight
    hgmask = wide_ref[OFF_MASK:OFF_MASK + GHN, :]          # (GHN, GD) head/group selector
    g1 = wide_ref[OFF_VEC + 0:OFF_VEC + 1, :]
    b1 = wide_ref[OFF_VEC + 1:OFF_VEC + 2, :]
    g2 = wide_ref[OFF_VEC + 2:OFF_VEC + 3, :]
    b2 = wide_ref[OFF_VEC + 3:OFF_VEC + 4, :]
    bl1 = wide_ref[OFF_VEC + 4:OFF_VEC + 5, :]
    rsum = small_ref[0:N, :]                               # (N, D) group-of-F sublane reducer

    # 1) fused QKV projection; Q section is partner-swapped and 1/sqrt(d_k)-scaled
    #    inside the packed weight, K/V sections are block-diagonal per group.
    qkv = jnp.dot(Xcat, wqkv_ref[...], preferred_element_type=f32)    # (N, 3*GD)
    qswap = qkv[:, 0:GD]
    kall = qkv[:, GD:2 * GD]
    vall = qkv[:, 2 * GD:3 * GD]

    # 2) all (group, head) attention scores in one masked stacked matmul
    #    (dot_general contracts the key dim -> no materialized K.T).
    lhs = jnp.broadcast_to(qswap[None], (G * H, N, GD)).reshape(GHN, GD) * hgmask
    sc = jax.lax.dot_general(lhs, kall, (((1,), (1,)), ((), ())),
                             preferred_element_type=f32)              # (GHN, N)

    # 3) softmax over the N keys (EUP approx reciprocal, off the VPU chain)
    m = jnp.max(sc, axis=-1, keepdims=True)
    e = jnp.exp(sc - m)
    attn = e * pl.reciprocal(jnp.sum(e, axis=-1, keepdims=True), approx=True)

    # 4) context against ALL groups' values in one push; wrong-group / cross-head
    #    columns are garbage and are zeroed by hgmask in the fold below.
    ctx = jnp.dot(attn, vall, preferred_element_type=f32)             # (GHN, GD)

    # 5) fold the (group, head) row blocks back into the head-concat context layout
    acc = ctx * hgmask
    rows = GHN
    while rows > N:                         # static log2 tree over row halves
        rows //= 2
        acc = acc[0:rows, :] + acc[rows:2 * rows, :]
    scat = acc                                                        # (N, GD)

    # 6) fc(context.transpose(1,2).reshape(-1, H*dv)) reproduced without any lane
    #    reshape: Gboth (trans_a dot) -> per-row block select -> shared 0/1 reducer.
    gboth = jax.lax.dot_general(scat, wfc_ref[...], (((0,), (0,)), ((), ())),
                                preferred_element_type=f32)           # (GD, 2*FD)
    t2_blocks = []
    for g in range(G):
        blk = gboth[g * D:(g + 1) * D, BR[g] * FD:(BR[g] + 1) * FD]   # (D, FD)
        t2 = blk[:, 0:D] * small_ref[N:N + D, 0:1]
        for u in range(1, F):
            t2 = t2 + blk[:, u * D:(u + 1) * D] * small_ref[N:N + D, u:u + 1]
        t2_blocks.append(t2)
    t2cat = jnp.concatenate(t2_blocks, axis=1)                        # (D, GD)
    out_fc = jnp.dot(rsum, t2cat, preferred_element_type=f32)         # (N, GD)

    # 7) residual + LayerNorm, fused (block-diag) l1, residual + LayerNorm
    def group_ln(v):                        # per-group LN statistics over D lanes
        parts = []
        for g in range(G):
            vg = v[:, g * D:(g + 1) * D]
            mu = jnp.mean(vg, axis=-1, keepdims=True)
            c = vg - mu
            var = jnp.mean(c * c, axis=-1, keepdims=True)
            parts.append(c * jax.lax.rsqrt(var + EPS))
        return jnp.concatenate(parts, axis=1)

    xa = group_ln(out_fc + Xcat) * g1 + b1
    o2 = jnp.dot(xa, wl1_bd, preferred_element_type=f32) + bl1
    out_ref[0] = group_ln(o2 + xa) * g2 + b2                          # (N, GD) lane-dense


# ---------------------------------------------------------------------------
# One-time weight/mask packing (host side, outside the hot path)
# ---------------------------------------------------------------------------
def prepare_params(p):
    scale = 1.0 / math.sqrt(DK)
    WQ = [np.asarray(p['wq']) * scale, np.asarray(p['wq1']) * scale]
    WK = [np.asarray(p['wk']), np.asarray(p['wk1'])]
    WV = [np.asarray(p['wv']), np.asarray(p['wv1'])]
    WL1 = [np.asarray(p['wl1']), np.asarray(p['wl1_1'])]

    # fused QKV weight: Q section routes input group qg(g)->output group g (partner swap,
    # so the score matmul contracts Q of the query branch against K of the key branch);
    # K/V sections are block-diagonal; weight chosen per group's branch.
    wqkv = np.zeros((GD, 3 * GD), np.float32)
    wl1bd = np.zeros((GD, GD), np.float32)
    for g in range(G):
        qi = QG[g]
        wqkv[qi * D:(qi + 1) * D, g * D:(g + 1) * D] = WQ[BR[qi]]
        wqkv[g * D:(g + 1) * D, GD + g * D:GD + (g + 1) * D] = WK[BR[g]]
        wqkv[g * D:(g + 1) * D, 2 * GD + g * D:2 * GD + (g + 1) * D] = WV[BR[g]]
        wl1bd[g * D:(g + 1) * D, g * D:(g + 1) * D] = WL1[BR[g]]

    # fc weight re-packed so the module's transpose(1,2).reshape scramble needs no lane
    # reshape in-kernel:  wfc_cat[w, u*D + j] = Wfc[u*N + w, j]
    def fc_pack(w):
        w = np.asarray(w)
        return np.transpose(w.reshape(F, N, D), (1, 0, 2)).reshape(N, F * D)
    wfc_slab = np.concatenate([fc_pack(p['wfc']), fc_pack(p['wfc1'])], axis=1)  # (N, 2*FD)

    # constant head/group selector (shared by the score matmul mask and the ctx fold)
    hgmask = np.zeros((GHN, GD), np.float32)
    for g in range(G):
        for h in range(H):
            r0 = (g * H + h) * N
            hgmask[r0:r0 + N, g * D + h * DK:g * D + (h + 1) * DK] = 1.0

    # LN affine params + l1 biases laid out per lane-group (by branch)
    def cat_groups(a, b):
        return np.concatenate([np.asarray(a if BR[g] == 0 else b) for g in range(G)], axis=1)
    vec = np.concatenate([
        cat_groups(p['g_an1'], p['g_an1_1']),
        cat_groups(p['b_an1'], p['b_an1_1']),
        cat_groups(p['g_an2'], p['g_an2_1']),
        cat_groups(p['b_an2'], p['b_an2_1']),
        cat_groups(p['bl1'], p['bl1_1']),
    ], axis=0)                                                                   # (5, GD)

    wide = np.zeros((WIDE_ROWS, GD), np.float32)
    wide[OFF_WL1:OFF_WL1 + GD, :] = wl1bd
    wide[OFF_MASK:OFF_MASK + GHN, :] = hgmask
    wide[OFF_VEC:OFF_VEC + 5, :] = vec

    # small constants: Rsum (0/1 group-of-F reducer) and the T row-select columns
    small = np.zeros((N + D, D), np.float32)
    for r in range(N):
        small[r, r * F:(r + 1) * F] = 1.0
    for i in range(D):
        small[N + i, i % F] = 1.0

    return {
        'wqkv': jnp.asarray(wqkv),      # (GD, 3*GD)
        'wfc': jnp.asarray(wfc_slab),   # (N, 2*FD)
        'wide': jnp.asarray(wide),      # (WIDE_ROWS, GD)
        'small': jnp.asarray(small),    # (N+D, D)
    }


# ---------------------------------------------------------------------------
# Wrapper: batched single pallas_call, parallel grid over instance-pair chunks
# ---------------------------------------------------------------------------
@jax.jit
def encoder_layer_two(X, X1, prep):
    B = X.shape[0]
    assert B % P == 0
    B2 = B // P

    # pack P pairs per grid step along lanes: column group g = 2*pair_in_step + branch
    xb = jnp.stack([X, X1], axis=1)                                    # (B, 2, N, D)
    xb = xb.reshape(B2, P, 2, N, D).transpose(0, 3, 1, 2, 4).reshape(B2, N, GD)

    def const_spec(shape):
        return pl.BlockSpec(shape, lambda s: (0, 0))

    packed = pl.pallas_call(
        _fused_kernel,
        out_shape=jax.ShapeDtypeStruct((B2, N, GD), jnp.float32),
        grid=(B2,),
        in_specs=[
            pl.BlockSpec((1, N, GD), lambda s: (s, 0, 0)),
            const_spec(prep['wqkv'].shape),
            const_spec(prep['wfc'].shape),
            const_spec(prep['wide'].shape),
            const_spec(prep['small'].shape),
        ],
        out_specs=pl.BlockSpec((1, N, GD), lambda s: (s, 0, 0)),
        compiler_params=pltpu.CompilerParams(dimension_semantics=("parallel",)),
        cost_estimate=pl.CostEstimate(flops=9_000_000, transcendentals=5_000,
                                      bytes_accessed=380_000),
    )(xb, prep['wqkv'], prep['wfc'], prep['wide'], prep['small'])

    out = packed.reshape(B2, N, P, 2, D).transpose(0, 2, 3, 1, 4).reshape(B, 2, N, D)
    return out[:, 0], out[:, 1]


# ---------------------------------------------------------------------------
# Pure-JAX reference (mirrors the PyTorch forward exactly) for verification
# ---------------------------------------------------------------------------
def _reference_pair(X, X1, p):
    def heads(x, w):
        return jnp.transpose((x @ w).reshape(-1, H, DK), (1, 0, 2))

    Q, K, V = heads(X, p['wq']), heads(X, p['wk']), heads(X, p['wv'])
    Q1, K1, V1 = heads(X1, p['wq1']), heads(X1, p['wk1']), heads(X1, p['wv1'])
    scale = 1.0 / math.sqrt(DK)
    s = jnp.einsum('hqd,hkd->hqk', Q1, K) * scale
    s1 = jnp.einsum('hqd,hkd->hqk', Q, K1) * scale
    a = jax.nn.softmax(s, axis=-1)
    a1 = jax.nn.softmax(s1, axis=-1)
    c = jnp.einsum('hqk,hkd->hqd', a, V)
    c1 = jnp.einsum('hqk,hkd->hqd', a1, V1)
    c = jnp.transpose(c, (0, 2, 1)).reshape(-1, H * DK)
    c1 = jnp.transpose(c1, (0, 2, 1)).reshape(-1, H * DK)
    out, out1 = c @ p['wfc'], c1 @ p['wfc1']

    def ln(v, g, b):
        mu = v.mean(-1, keepdims=True)
        var = ((v - mu) ** 2).mean(-1, keepdims=True)
        return (v - mu) / jnp.sqrt(var + EPS) * g + b

    Xn = ln(out + X, p['g_an1'], p['b_an1'])
    o = Xn @ p['wl1'] + p['bl1']
    Xn = ln(o + Xn, p['g_an2'], p['b_an2'])
    X1n = ln(out1 + X1, p['g_an1_1'], p['b_an1_1'])
    o1 = X1n @ p['wl1_1'] + p['bl1_1']
    X1n = ln(o1 + X1n, p['g_an2_1'], p['b_an2_1'])
    return Xn, X1n


def _init_params(key):
    ks = jax.random.split(key, 16)
    w = lambda k: (0.05 * jax.random.normal(k, (D, D))).astype(jnp.float32)
    p = {
        'wq': w(ks[0]), 'wk': w(ks[1]), 'wv': w(ks[2]),
        'wq1': w(ks[3]), 'wk1': w(ks[4]), 'wv1': w(ks[5]),
        'wfc': w(ks[6]), 'wfc1': w(ks[7]),
        'wl1': w(ks[8]), 'bl1': (0.1 * jax.random.normal(ks[9], (1, D))).astype(jnp.float32),
        'wl1_1': w(ks[10]), 'bl1_1': (0.1 * jax.random.normal(ks[11], (1, D))).astype(jnp.float32),
    }
    ln_ks = jax.random.split(ks[12], 8)
    for i, name in enumerate(['an1', 'an2', 'an1_1', 'an2_1']):
        p[f'g_{name}'] = (1.0 + 0.1 * jax.random.normal(ln_ks[2 * i], (1, D))).astype(jnp.float32)
        p[f'b_{name}'] = (0.1 * jax.random.normal(ln_ks[2 * i + 1], (1, D))).astype(jnp.float32)
    return p


if __name__ == "__main__":
    B = 8  # batch of instance-pairs -> 4 grid steps (>=2 so v7x megacore can split)
    key = jax.random.PRNGKey(0)
    kx, kx1, kp = jax.random.split(key, 3)
    X = jax.random.normal(kx, (B, N, D), dtype=jnp.float32)
    X1 = jax.random.normal(kx1, (B, N, D), dtype=jnp.float32)
    params = _init_params(kp)
    prep = prepare_params(params)   # one-time weight/mask packing

    Xo, X1o = encoder_layer_two(X, X1, prep)
    Xo = jax.block_until_ready(Xo)
    X1o = jax.block_until_ready(X1o)

    refs = [_reference_pair(X[b], X1[b], params) for b in range(B)]
    Xr = jnp.stack([r[0] for r in refs])
    X1r = jnp.stack([r[1] for r in refs])

    assert Xo.shape == (B, N, D) and X1o.shape == (B, N, D)
    err = max(float(jnp.max(jnp.abs(Xo - Xr))), float(jnp.max(jnp.abs(X1o - X1r))))
    # tolerance 1e-3 to accommodate the EUP approx-reciprocal softmax denominator
    assert err < 1e-3, err
    print("KERNEL_OK")
</pallas_src>

<mosaic_0001>
module attributes {stable_mosaic.version = 11 : i64} {
  func.func @_fused_kernel(%arg0: i32, %arg1: memref<1x8x128xf32, #tpu.memory_space<vmem>>, %arg2: memref<128x384xf32, #tpu.memory_space<vmem>>, %arg3: memref<8x256xf32, #tpu.memory_space<vmem>>, %arg4: memref<264x128xf32, #tpu.memory_space<vmem>>, %arg5: memref<40x32xf32, #tpu.memory_space<vmem>>, %arg6: memref<1x8x128xf32, #tpu.memory_space<vmem>>) attributes {dimension_semantics = [#tpu.dimension_semantics<parallel>], iteration_bounds = array<i64: 4>, scalar_prefetch = 0 : i64, scratch_operands = 0 : i64, tpu.core_type = #tpu.core_type<tc>, window_params = [{transform_indices = @transform_0, window_bounds = array<i64: 1, 8, 128>}, {pipeline_mode = #tpu.pipeline_mode<synchronous>, transform_indices = @transform_1, window_bounds = array<i64: 128, 384>}, {pipeline_mode = #tpu.pipeline_mode<synchronous>, transform_indices = @transform_2, window_bounds = array<i64: 8, 256>}, {pipeline_mode = #tpu.pipeline_mode<synchronous>, transform_indices = @transform_3, window_bounds = array<i64: 264, 128>}, {pipeline_mode = #tpu.pipeline_mode<synchronous>, transform_indices = @transform_4, window_bounds = array<i64: 40, 32>}, {transform_indices = @transform_5, window_bounds = array<i64: 1, 8, 128>}]} {
    %c0 = arith.constant 0 : index
    %c0_0 = arith.constant 0 : index
    %c0_1 = arith.constant 0 : index
    %0 = vector.load %arg1[%c0, %c0_0, %c0_1] : memref<1x8x128xf32, #tpu.memory_space<vmem>>, vector<1x8x128xf32>
    %1 = vector.shape_cast %0 : vector<1x8x128xf32> to vector<8x128xf32>
    %c0_2 = arith.constant 0 : index
    %c0_3 = arith.constant 0 : index
    %2 = vector.load %arg4[%c0_2, %c0_3] : memref<264x128xf32, #tpu.memory_space<vmem>>, vector<128x128xf32>
    %c128 = arith.constant 128 : index
    %c0_4 = arith.constant 0 : index
    %3 = vector.load %arg4[%c128, %c0_4] : memref<264x128xf32, #tpu.memory_space<vmem>>, vector<128x128xf32>
    %c256 = arith.constant 256 : index
    %c0_5 = arith.constant 0 : index
    %4 = vector.load %arg4[%c256, %c0_5] : memref<264x128xf32, #tpu.memory_space<vmem>>, vector<1x128xf32>
    %c257 = arith.constant 257 : index
    %c0_6 = arith.constant 0 : index
    %5 = vector.load %arg4[%c257, %c0_6] : memref<264x128xf32, #tpu.memory_space<vmem>>, vector<1x128xf32>
    %c258 = arith.constant 258 : index
    %c0_7 = arith.constant 0 : index
    %6 = vector.load %arg4[%c258, %c0_7] : memref<264x128xf32, #tpu.memory_space<vmem>>, vector<1x128xf32>
    %c259 = arith.constant 259 : index
    %c0_8 = arith.constant 0 : index
    %7 = vector.load %arg4[%c259, %c0_8] : memref<264x128xf32, #tpu.memory_space<vmem>>, vector<1x128xf32>
    %c260 = arith.constant 260 : index
    %c0_9 = arith.constant 0 : index
    %8 = vector.load %arg4[%c260, %c0_9] : memref<264x128xf32, #tpu.memory_space<vmem>>, vector<1x128xf32>
    %c0_10 = arith.constant 0 : index
    %c0_11 = arith.constant 0 : index
    %9 = vector.load %arg5[%c0_10, %c0_11] : memref<40x32xf32, #tpu.memory_space<vmem>>, vector<8x32xf32>
    %c0_12 = arith.constant 0 : index
    %c0_13 = arith.constant 0 : index
    %10 = vector.load %arg2[%c0_12, %c0_13] : memref<128x384xf32, #tpu.memory_space<vmem>>, vector<128x384xf32>
    %cst = arith.constant dense<0.000000e+00> : vector<8x384xf32>
    %11 = tpu.matmul %1, %10, %cst {dimension_numbers = #tpu.dot_dimension_numbers<[1], [0], [0], [1], [0, 0, 1, 1], [], []>} : vector<8x128xf32>, vector<128x384xf32>, vector<8x384xf32> -> vector<8x384xf32>
    %12 = vector.extract_strided_slice %11 {offsets = [0, 0], sizes = [8, 128], strides = [1, 1]} : vector<8x384xf32> to vector<8x128xf32>
    %13 = vector.extract_strided_slice %11 {offsets = [0, 128], sizes = [8, 128], strides = [1, 1]} : vector<8x384xf32> to vector<8x128xf32>
    %14 = vector.extract_strided_slice %11 {offsets = [0, 256], sizes = [8, 128], strides = [1, 1]} : vector<8x384xf32> to vector<8x128xf32>
    %15 = vector.shape_cast %12 : vector<8x128xf32> to vector<1x8x128xf32>
    %16 = vector.shape_cast %15 : vector<1x8x128xf32> to vector<1x8x128xf32>
    %17 = vector.broadcast %16 : vector<1x8x128xf32> to vector<16x8x128xf32>
    %18 = vector.shape_cast %17 : vector<16x8x128xf32> to vector<128x128xf32>
    %19 = arith.mulf %18, %3 : vector<128x128xf32>
    %cst_14 = arith.constant dense<0.000000e+00> : vector<128x8xf32>
    %20 = tpu.matmul %19, %13, %cst_14 {dimension_numbers = #tpu.dot_dimension_numbers<[1], [1], [0], [0], [0, 0, 1, 0], [], []>} : vector<128x128xf32>, vector<8x128xf32>, vector<128x8xf32> -> vector<128x8xf32>
    %cst_15 = arith.constant dense<0xFF800000> : vector<128xf32>
    %21 = vector.multi_reduction <maximumf>, %20, %cst_15 [1] : vector<128x8xf32> to vector<128xf32>
    %22 = vector.shape_cast %21 : vector<128xf32> to vector<128x1xf32>
    %23 = vector.broadcast %22 : vector<128x1xf32> to vector<128x8xf32>
    %24 = arith.subf %20, %23 : vector<128x8xf32>
    %25 = math.exp %24 : vector<128x8xf32>
    %cst_16 = arith.constant dense<0.000000e+00> : vector<128xf32>
    %26 = vector.multi_reduction <add>, %25, %cst_16 [1] : vector<128x8xf32> to vector<128xf32>
    %27 = vector.shape_cast %26 : vector<128xf32> to vector<128x1xf32>
    %28 = tpu.reciprocal %27 {approx = true} : vector<128x1xf32> -> vector<128x1xf32>
    %29 = vector.broadcast %28 : vector<128x1xf32> to vector<128x8xf32>
    %30 = arith.mulf %25, %29 : vector<128x8xf32>
    %cst_17 = arith.constant dense<0.000000e+00> : vector<128x128xf32>
    %31 = tpu.matmul %30, %14, %cst_17 {dimension_numbers = #tpu.dot_dimension_numbers<[1], [0], [0], [1], [0, 0, 1, 1], [], []>} : vector<128x8xf32>, vector<8x128xf32>, vector<128x128xf32> -> vector<128x128xf32>
    %32 = arith.mulf %31, %3 : vector<128x128xf32>
    %33 = vector.extract_strided_slice %32 {offsets = [0, 0], sizes = [64, 128], strides = [1, 1]} : vector<128x128xf32> to vector<64x128xf32>
    %34 = vector.extract_strided_slice %32 {offsets = [64, 0], sizes = [64, 128], strides = [1, 1]} : vector<128x128xf32> to vector<64x128xf32>
    %35 = arith.addf %33, %34 : vector<64x128xf32>
    %36 = vector.extract_strided_slice %35 {offsets = [0, 0], sizes = [32, 128], strides = [1, 1]} : vector<64x128xf32> to vector<32x128xf32>
    %37 = vector.extract_strided_slice %35 {offsets = [32, 0], sizes = [32, 128], strides = [1, 1]} : vector<64x128xf32> to vector<32x128xf32>
    %38 = arith.addf %36, %37 : vector<32x128xf32>
    %39 = vector.extract_strided_slice %38 {offsets = [0, 0], sizes = [16, 128], strides = [1, 1]} : vector<32x128xf32> to vector<16x128xf32>
    %40 = vector.extract_strided_slice %38 {offsets = [16, 0], sizes = [16, 128], strides = [1, 1]} : vector<32x128xf32> to vector<16x128xf32>
    %41 = arith.addf %39, %40 : vector<16x128xf32>
    %42 = vector.extract_strided_slice %41 {offsets = [0, 0], sizes = [8, 128], strides = [1, 1]} : vector<16x128xf32> to vector<8x128xf32>
    %43 = vector.extract_strided_slice %41 {offsets = [8, 0], sizes = [8, 128], strides = [1, 1]} : vector<16x128xf32> to vector<8x128xf32>
    %44 = arith.addf %42, %43 : vector<8x128xf32>
    %c0_18 = arith.constant 0 : index
    %c0_19 = arith.constant 0 : index
    %45 = vector.load %arg3[%c0_18, %c0_19] : memref<8x256xf32, #tpu.memory_space<vmem>>, vector<8x256xf32>
    %cst_20 = arith.constant dense<0.000000e+00> : vector<128x256xf32>
    %46 = tpu.matmul %44, %45, %cst_20 {dimension_numbers = #tpu.dot_dimension_numbers<[0], [0], [1], [1], [0, 1, 1, 1], [], []>} : vector<8x128xf32>, vector<8x256xf32>, vector<128x256xf32> -> vector<128x256xf32>
    %47 = vector.extract_strided_slice %46 {offsets = [0, 0], sizes = [32, 128], strides = [1, 1]} : vector<128x256xf32> to vector<32x128xf32>
    %48 = vector.extract_strided_slice %47 {offsets = [0, 0], sizes = [32, 32], strides = [1, 1]} : vector<32x128xf32> to vector<32x32xf32>
    %c8 = arith.constant 8 : index
    %c0_21 = arith.constant 0 : index
    %49 = vector.load %arg5[%c8, %c0_21] : memref<40x32xf32, #tpu.memory_space<vmem>>, vector<32x1xf32>
    %50 = vector.broadcast %49 : vector<32x1xf32> to vector<32x32xf32>
    %51 = arith.mulf %48, %50 : vector<32x32xf32>
    %52 = vector.extract_strided_slice %47 {offsets = [0, 32], sizes = [32, 32], strides = [1, 1]} : vector<32x128xf32> to vector<32x32xf32>
    %c8_22 = arith.constant 8 : index
    %c1 = arith.constant 1 : index
    %53 = vector.load %arg5[%c8_22, %c1] : memref<40x32xf32, #tpu.memory_space<vmem>>, vector<32x1xf32>
    %54 = vector.broadcast %53 : vector<32x1xf32> to vector<32x32xf32>
    %55 = arith.mulf %52, %54 : vector<32x32xf32>
    %56 = arith.addf %51, %55 : vector<32x32xf32>
    %57 = vector.extract_strided_slice %47 {offsets = [0, 64], sizes = [32, 32], strides = [1, 1]} : vector<32x128xf32> to vector<32x32xf32>
    %c8_23 = arith.constant 8 : index
    %c2 = arith.constant 2 : index
    %58 = vector.load %arg5[%c8_23, %c2] : memref<40x32xf32, #tpu.memory_space<vmem>>, vector<32x1xf32>
    %59 = vector.broadcast %58 : vector<32x1xf32> to vector<32x32xf32>
    %60 = arith.mulf %57, %59 : vector<32x32xf32>
    %61 = arith.addf %56, %60 : vector<32x32xf32>
    %62 = vector.extract_strided_slice %47 {offsets = [0, 96], sizes = [32, 32], strides = [1, 1]} : vector<32x128xf32> to vector<32x32xf32>
    %c8_24 = arith.constant 8 : index
    %c3 = arith.constant 3 : index
    %63 = vector.load %arg5[%c8_24, %c3] : memref<40x32xf32, #tpu.memory_space<vmem>>, vector<32x1xf32>
    %64 = vector.broadcast %63 : vector<32x1xf32> to vector<32x32xf32>
    %65 = arith.mulf %62, %64 : vector<32x32xf32>
    %66 = arith.addf %61, %65 : vector<32x32xf32>
    %67 = vector.extract_strided_slice %46 {offsets = [32, 128], sizes = [32, 128], strides = [1, 1]} : vector<128x256xf32> to vector<32x128xf32>
    %68 = vector.extract_strided_slice %67 {offsets = [0, 0], sizes = [32, 32], strides = [1, 1]} : vector<32x128xf32> to vector<32x32xf32>
    %c8_25 = arith.constant 8 : index
    %c0_26 = arith.constant 0 : index
    %69 = vector.load %arg5[%c8_25, %c0_26] : memref<40x32xf32, #tpu.memory_space<vmem>>, vector<32x1xf32>
    %70 = vector.broadcast %69 : vector<32x1xf32> to vector<32x32xf32>
    %71 = arith.mulf %68, %70 : vector<32x32xf32>
    %72 = vector.extract_strided_slice %67 {offsets = [0, 32], sizes = [32, 32], strides = [1, 1]} : vector<32x128xf32> to vector<32x32xf32>
    %c8_27 = arith.constant 8 : index
    %c1_28 = arith.constant 1 : index
    %73 = vector.load %arg5[%c8_27, %c1_28] : memref<40x32xf32, #tpu.memory_space<vmem>>, vector<32x1xf32>
    %74 = vector.broadcast %73 : vector<32x1xf32> to vector<32x32xf32>
    %75 = arith.mulf %72, %74 : vector<32x32xf32>
    %76 = arith.addf %71, %75 : vector<32x32xf32>
    %77 = vector.extract_strided_slice %67 {offsets = [0, 64], sizes = [32, 32], strides = [1, 1]} : vector<32x128xf32> to vector<32x32xf32>
    %c8_29 = arith.constant 8 : index
    %c2_30 = arith.constant 2 : index
    %78 = vector.load %arg5[%c8_29, %c2_30] : memref<40x32xf32, #tpu.memory_space<vmem>>, vector<32x1xf32>
    %79 = vector.broadcast %78 : vector<32x1xf32> to vector<32x32xf32>
    %80 = arith.mulf %77, %79 : vector<32x32xf32>
    %81 = arith.addf %76, %80 : vector<32x32xf32>
    %82 = vector.extract_strided_slice %67 {offsets = [0, 96], sizes = [32, 32], strides = [1, 1]} : vector<32x128xf32> to vector<32x32xf32>
    %c8_31 = arith.constant 8 : index
    %c3_32 = arith.constant 3 : index
    %83 = vector.load %arg5[%c8_31, %c3_32] : memref<40x32xf32, #tpu.memory_space<vmem>>, vector<32x1xf32>
    %84 = vector.broadcast %83 : vector<32x1xf32> to vector<32x32xf32>
    %85 = arith.mulf %82, %84 : vector<32x32xf32>
    %86 = arith.addf %81, %85 : vector<32x32xf32>
    %87 = vector.extract_strided_slice %46 {offsets = [64, 0], sizes = [32, 128], strides = [1, 1]} : vector<128x256xf32> to vector<32x128xf32>
    %88 = vector.extract_strided_slice %87 {offsets = [0, 0], sizes = [32, 32], strides = [1, 1]} : vector<32x128xf32> to vector<32x32xf32>
    %c8_33 = arith.constant 8 : index
    %c0_34 = arith.constant 0 : index
    %89 = vector.load %arg5[%c8_33, %c0_34] : memref<40x32xf32, #tpu.memory_space<vmem>>, vector<32x1xf32>
    %90 = vector.broadcast %89 : vector<32x1xf32> to vector<32x32xf32>
    %91 = arith.mulf %88, %90 : vector<32x32xf32>
    %92 = vector.extract_strided_slice %87 {offsets = [0, 32], sizes = [32, 32], strides = [1, 1]} : vector<32x128xf32> to vector<32x32xf32>
    %c8_35 = arith.constant 8 : index
    %c1_36 = arith.constant 1 : index
    %93 = vector.load %arg5[%c8_35, %c1_36] : memref<40x32xf32, #tpu.memory_space<vmem>>, vector<32x1xf32>
    %94 = vector.broadcast %93 : vector<32x1xf32> to vector<32x32xf32>
    %95 = arith.mulf %92, %94 : vector<32x32xf32>
    %96 = arith.addf %91, %95 : vector<32x32xf32>
    %97 = vector.extract_strided_slice %87 {offsets = [0, 64], sizes = [32, 32], strides = [1, 1]} : vector<32x128xf32> to vector<32x32xf32>
    %c8_37 = arith.constant 8 : index
    %c2_38 = arith.constant 2 : index
    %98 = vector.load %arg5[%c8_37, %c2_38] : memref<40x32xf32, #tpu.memory_space<vmem>>, vector<32x1xf32>
    %99 = vector.broadcast %98 : vector<32x1xf32> to vector<32x32xf32>
    %100 = arith.mulf %97, %99 : vector<32x32xf32>
    %101 = arith.addf %96, %100 : vector<32x32xf32>
    %102 = vector.extract_strided_slice %87 {offsets = [0, 96], sizes = [32, 32], strides = [1, 1]} : vector<32x128xf32> to vector<32x32xf32>
    %c8_39 = arith.constant 8 : index
    %c3_40 = arith.constant 3 : index
    %103 = vector.load %arg5[%c8_39, %c3_40] : memref<40x32xf32, #tpu.memory_space<vmem>>, vector<32x1xf32>
    %104 = vector.broadcast %103 : vector<32x1xf32> to vector<32x32xf32>
    %105 = arith.mulf %102, %104 : vector<32x32xf32>
    %106 = arith.addf %101, %105 : vector<32x32xf32>
    %107 = vector.extract_strided_slice %46 {offsets = [96, 128], sizes = [32, 128], strides = [1, 1]} : vector<128x256xf32> to vector<32x128xf32>
    %108 = vector.extract_strided_slice %107 {offsets = [0, 0], sizes = [32, 32], strides = [1, 1]} : vector<32x128xf32> to vector<32x32xf32>
    %c8_41 = arith.constant 8 : index
    %c0_42 = arith.constant 0 : index
    %109 = vector.load %arg5[%c8_41, %c0_42] : memref<40x32xf32, #tpu.memory_space<vmem>>, vector<32x1xf32>
    %110 = vector.broadcast %109 : vector<32x1xf32> to vector<32x32xf32>
    %111 = arith.mulf %108, %110 : vector<32x32xf32>
    %112 = vector.extract_strided_slice %107 {offsets = [0, 32], sizes = [32, 32], strides = [1, 1]} : vector<32x128xf32> to vector<32x32xf32>
    %c8_43 = arith.constant 8 : index
    %c1_44 = arith.constant 1 : index
    %113 = vector.load %arg5[%c8_43, %c1_44] : memref<40x32xf32, #tpu.memory_space<vmem>>, vector<32x1xf32>
    %114 = vector.broadcast %113 : vector<32x1xf32> to vector<32x32xf32>
    %115 = arith.mulf %112, %114 : vector<32x32xf32>
    %116 = arith.addf %111, %115 : vector<32x32xf32>
    %117 = vector.extract_strided_slice %107 {offsets = [0, 64], sizes = [32, 32], strides = [1, 1]} : vector<32x128xf32> to vector<32x32xf32>
    %c8_45 = arith.constant 8 : index
    %c2_46 = arith.constant 2 : index
    %118 = vector.load %arg5[%c8_45, %c2_46] : memref<40x32xf32, #tpu.memory_space<vmem>>, vector<32x1xf32>
    %119 = vector.broadcast %118 : vector<32x1xf32> to vector<32x32xf32>
    %120 = arith.mulf %117, %119 : vector<32x32xf32>
    %121 = arith.addf %116, %120 : vector<32x32xf32>
    %122 = vector.extract_strided_slice %107 {offsets = [0, 96], sizes = [32, 32], strides = [1, 1]} : vector<32x128xf32> to vector<32x32xf32>
    %c8_47 = arith.constant 8 : index
    %c3_48 = arith.constant 3 : index
    %123 = vector.load %arg5[%c8_47, %c3_48] : memref<40x32xf32, #tpu.memory_space<vmem>>, vector<32x1xf32>
    %124 = vector.broadcast %123 : vector<32x1xf32> to vector<32x32xf32>
    %125 = arith.mulf %122, %124 : vector<32x32xf32>
    %126 = arith.addf %121, %125 : vector<32x32xf32>
    %127 = tpu.concatenate %66, %86, %106, %126 in 1 : vector<32x32xf32>, vector<32x32xf32>, vector<32x32xf32>, vector<32x32xf32> -> vector<32x128xf32>
    %cst_49 = arith.constant dense<0.000000e+00> : vector<8x128xf32>
    %128 = tpu.matmul %9, %127, %cst_49 {dimension_numbers = #tpu.dot_dimension_numbers<[1], [0], [0], [1], [0, 0, 1, 1], [], []>} : vector<8x32xf32>, vector<32x128xf32>, vector<8x128xf32> -> vector<8x128xf32>
    %129 = arith.addf %128, %1 : vector<8x128xf32>
    %130 = vector.extract_strided_slice %129 {offsets = [0, 0], sizes = [8, 32], strides = [1, 1]} : vector<8x128xf32> to vector<8x32xf32>
    %cst_50 = arith.constant dense<0.000000e+00> : vector<8xf32>
    %131 = vector.multi_reduction <add>, %130, %cst_50 [1] : vector<8x32xf32> to vector<8xf32>
    %132 = vector.shape_cast %131 : vector<8xf32> to vector<8x1xf32>
    %cst_51 = arith.constant 3.200000e+01 : f32
    %133 = vector.broadcast %cst_51 : f32 to vector<8x1xf32>
    %134 = arith.divf %132, %133 : vector<8x1xf32>
    %135 = vector.broadcast %134 : vector<8x1xf32> to vector<8x32xf32>
    %136 = arith.subf %130, %135 : vector<8x32xf32>
    %137 = arith.mulf %136, %136 : vector<8x32xf32>
    %cst_52 = arith.constant dense<0.000000e+00> : vector<8xf32>
    %138 = vector.multi_reduction <add>, %137, %cst_52 [1] : vector<8x32xf32> to vector<8xf32>
    %139 = vector.shape_cast %138 : vector<8xf32> to vector<8x1xf32>
    %cst_53 = arith.constant 3.200000e+01 : f32
    %140 = vector.broadcast %cst_53 : f32 to vector<8x1xf32>
    %141 = arith.divf %139, %140 : vector<8x1xf32>
    %cst_54 = arith.constant 9.99999974E-6 : f32
    %142 = vector.broadcast %cst_54 : f32 to vector<8x1xf32>
    %143 = arith.addf %141, %142 : vector<8x1xf32>
    %144 = math.rsqrt %143 : vector<8x1xf32>
    %145 = vector.broadcast %144 : vector<8x1xf32> to vector<8x32xf32>
    %146 = arith.mulf %136, %145 : vector<8x32xf32>
    %147 = vector.extract_strided_slice %129 {offsets = [0, 32], sizes = [8, 32], strides = [1, 1]} : vector<8x128xf32> to vector<8x32xf32>
    %cst_55 = arith.constant dense<0.000000e+00> : vector<8xf32>
    %148 = vector.multi_reduction <add>, %147, %cst_55 [1] : vector<8x32xf32> to vector<8xf32>
    %149 = vector.shape_cast %148 : vector<8xf32> to vector<8x1xf32>
    %cst_56 = arith.constant 3.200000e+01 : f32
    %150 = vector.broadcast %cst_56 : f32 to vector<8x1xf32>
    %151 = arith.divf %149, %150 : vector<8x1xf32>
    %152 = vector.broadcast %151 : vector<8x1xf32> to vector<8x32xf32>
    %153 = arith.subf %147, %152 : vector<8x32xf32>
    %154 = arith.mulf %153, %153 : vector<8x32xf32>
    %cst_57 = arith.constant dense<0.000000e+00> : vector<8xf32>
    %155 = vector.multi_reduction <add>, %154, %cst_57 [1] : vector<8x32xf32> to vector<8xf32>
    %156 = vector.shape_cast %155 : vector<8xf32> to vector<8x1xf32>
    %cst_58 = arith.constant 3.200000e+01 : f32
    %157 = vector.broadcast %cst_58 : f32 to vector<8x1xf32>
    %158 = arith.divf %156, %157 : vector<8x1xf32>
    %cst_59 = arith.constant 9.99999974E-6 : f32
    %159 = vector.broadcast %cst_59 : f32 to vector<8x1xf32>
    %160 = arith.addf %158, %159 : vector<8x1xf32>
    %161 = math.rsqrt %160 : vector<8x1xf32>
    %162 = vector.broadcast %161 : vector<8x1xf32> to vector<8x32xf32>
    %163 = arith.mulf %153, %162 : vector<8x32xf32>
    %164 = vector.extract_strided_slice %129 {offsets = [0, 64], sizes = [8, 32], strides = [1, 1]} : vector<8x128xf32> to vector<8x32xf32>
    %cst_60 = arith.constant dense<0.000000e+00> : vector<8xf32>
    %165 = vector.multi_reduction <add>, %164, %cst_60 [1] : vector<8x32xf32> to vector<8xf32>
    %166 = vector.shape_cast %165 : vector<8xf32> to vector<8x1xf32>
    %cst_61 = arith.constant 3.200000e+01 : f32
    %167 = vector.broadcast %cst_61 : f32 to vector<8x1xf32>
    %168 = arith.divf %166, %167 : vector<8x1xf32>
    %169 = vector.broadcast %168 : vector<8x1xf32> to vector<8x32xf32>
    %170 = arith.subf %164, %169 : vector<8x32xf32>
    %171 = arith.mulf %170, %170 : vector<8x32xf32>
    %cst_62 = arith.constant dense<0.000000e+00> : vector<8xf32>
    %172 = vector.multi_reduction <add>, %171, %cst_62 [1] : vector<8x32xf32> to vector<8xf32>
    %173 = vector.shape_cast %172 : vector<8xf32> to vector<8x1xf32>
    %cst_63 = arith.constant 3.200000e+01 : f32
    %174 = vector.broadcast %cst_63 : f32 to vector<8x1xf32>
    %175 = arith.divf %173, %174 : vector<8x1xf32>
    %cst_64 = arith.constant 9.99999974E-6 : f32
    %176 = vector.broadcast %cst_64 : f32 to vector<8x1xf32>
    %177 = arith.addf %175, %176 : vector<8x1xf32>
    %178 = math.rsqrt %177 : vector<8x1xf32>
    %179 = vector.broadcast %178 : vector<8x1xf32> to vector<8x32xf32>
    %180 = arith.mulf %170, %179 : vector<8x32xf32>
    %181 = vector.extract_strided_slice %129 {offsets = [0, 96], sizes = [8, 32], strides = [1, 1]} : vector<8x128xf32> to vector<8x32xf32>
    %cst_65 = arith.constant dense<0.000000e+00> : vector<8xf32>
    %182 = vector.multi_reduction <add>, %181, %cst_65 [1] : vector<8x32xf32> to vector<8xf32>
    %183 = vector.shape_cast %182 : vector<8xf32> to vector<8x1xf32>
    %cst_66 = arith.constant 3.200000e+01 : f32
    %184 = vector.broadcast %cst_66 : f32 to vector<8x1xf32>
    %185 = arith.divf %183, %184 : vector<8x1xf32>
    %186 = vector.broadcast %185 : vector<8x1xf32> to vector<8x32xf32>
    %187 = arith.subf %181, %186 : vector<8x32xf32>
    %188 = arith.mulf %187, %187 : vector<8x32xf32>
    %cst_67 = arith.constant dense<0.000000e+00> : vector<8xf32>
    %189 = vector.multi_reduction <add>, %188, %cst_67 [1] : vector<8x32xf32> to vector<8xf32>
    %190 = vector.shape_cast %189 : vector<8xf32> to vector<8x1xf32>
    %cst_68 = arith.constant 3.200000e+01 : f32
    %191 = vector.broadcast %cst_68 : f32 to vector<8x1xf32>
    %192 = arith.divf %190, %191 : vector<8x1xf32>
    %cst_69 = arith.constant 9.99999974E-6 : f32
    %193 = vector.broadcast %cst_69 : f32 to vector<8x1xf32>
    %194 = arith.addf %192, %193 : vector<8x1xf32>
    %195 = math.rsqrt %194 : vector<8x1xf32>
    %196 = vector.broadcast %195 : vector<8x1xf32> to vector<8x32xf32>
    %197 = arith.mulf %187, %196 : vector<8x32xf32>
    %198 = tpu.concatenate %146, %163, %180, %197 in 1 : vector<8x32xf32>, vector<8x32xf32>, vector<8x32xf32>, vector<8x32xf32> -> vector<8x128xf32>
    %199 = vector.broadcast %4 : vector<1x128xf32> to vector<8x128xf32>
    %200 = arith.mulf %198, %199 : vector<8x128xf32>
    %201 = vector.broadcast %5 : vector<1x128xf32> to vector<8x128xf32>
    %202 = arith.addf %200, %201 : vector<8x128xf32>
    %cst_70 = arith.constant dense<0.000000e+00> : vector<8x128xf32>
    %203 = tpu.matmul %202, %2, %cst_70 {dimension_numbers = #tpu.dot_dimension_numbers<[1], [0], [0], [1], [0, 0, 1, 1], [], []>} : vector<8x128xf32>, vector<128x128xf32>, vector<8x128xf32> -> vector<8x128xf32>
    %204 = vector.broadcast %8 : vector<1x128xf32> to vector<8x128xf32>
    %205 = arith.addf %203, %204 : vector<8x128xf32>
    %206 = arith.addf %205, %202 : vector<8x128xf32>
    %207 = vector.extract_strided_slice %206 {offsets = [0, 0], sizes = [8, 32], strides = [1, 1]} : vector<8x128xf32> to vector<8x32xf32>
    %cst_71 = arith.constant dense<0.000000e+00> : vector<8xf32>
    %208 = vector.multi_reduction <add>, %207, %cst_71 [1] : vector<8x32xf32> to vector<8xf32>
    %209 = vector.shape_cast %208 : vector<8xf32> to vector<8x1xf32>
    %cst_72 = arith.constant 3.200000e+01 : f32
    %210 = vector.broadcast %cst_72 : f32 to vector<8x1xf32>
    %211 = arith.divf %209, %210 : vector<8x1xf32>
    %212 = vector.broadcast %211 : vector<8x1xf32> to vector<8x32xf32>
    %213 = arith.subf %207, %212 : vector<8x32xf32>
    %214 = arith.mulf %213, %213 : vector<8x32xf32>
    %cst_73 = arith.constant dense<0.000000e+00> : vector<8xf32>
    %215 = vector.multi_reduction <add>, %214, %cst_73 [1] : vector<8x32xf32> to vector<8xf32>
    %216 = vector.shape_cast %215 : vector<8xf32> to vector<8x1xf32>
    %cst_74 = arith.constant 3.200000e+01 : f32
    %217 = vector.broadcast %cst_74 : f32 to vector<8x1xf32>
    %218 = arith.divf %216, %217 : vector<8x1xf32>
    %cst_75 = arith.constant 9.99999974E-6 : f32
    %219 = vector.broadcast %cst_75 : f32 to vector<8x1xf32>
    %220 = arith.addf %218, %219 : vector<8x1xf32>
    %221 = math.rsqrt %220 : vector<8x1xf32>
    %222 = vector.broadcast %221 : vector<8x1xf32> to vector<8x32xf32>
    %223 = arith.mulf %213, %222 : vector<8x32xf32>
    %224 = vector.extract_strided_slice %206 {offsets = [0, 32], sizes = [8, 32], strides = [1, 1]} : vector<8x128xf32> to vector<8x32xf32>
    %cst_76 = arith.constant dense<0.000000e+00> : vector<8xf32>
    %225 = vector.multi_reduction <add>, %224, %cst_76 [1] : vector<8x32xf32> to vector<8xf32>
    %226 = vector.shape_cast %225 : vector<8xf32> to vector<8x1xf32>
    %cst_77 = arith.constant 3.200000e+01 : f32
    %227 = vector.broadcast %cst_77 : f32 to vector<8x1xf32>
    %228 = arith.divf %226, %227 : vector<8x1xf32>
    %229 = vector.broadcast %228 : vector<8x1xf32> to vector<8x32xf32>
    %230 = arith.subf %224, %229 : vector<8x32xf32>
    %231 = arith.mulf %230, %230 : vector<8x32xf32>
    %cst_78 = arith.constant dense<0.000000e+00> : vector<8xf32>
    %232 = vector.multi_reduction <add>, %231, %cst_78 [1] : vector<8x32xf32> to vector<8xf32>
    %233 = vector.shape_cast %232 : vector<8xf32> to vector<8x1xf32>
    %cst_79 = arith.constant 3.200000e+01 : f32
    %234 = vector.broadcast %cst_79 : f32 to vector<8x1xf32>
    %235 = arith.divf %233, %234 : vector<8x1xf32>
    %cst_80 = arith.constant 9.99999974E-6 : f32
    %236 = vector.broadcast %cst_80 : f32 to vector<8x1xf32>
    %237 = arith.addf %235, %236 : vector<8x1xf32>
    %238 = math.rsqrt %237 : vector<8x1xf32>
    %239 = vector.broadcast %238 : vector<8x1xf32> to vector<8x32xf32>
    %240 = arith.mulf %230, %239 : vector<8x32xf32>
    %241 = vector.extract_strided_slice %206 {offsets = [0, 64], sizes = [8, 32], strides = [1, 1]} : vector<8x128xf32> to vector<8x32xf32>
    %cst_81 = arith.constant dense<0.000000e+00> : vector<8xf32>
    %242 = vector.multi_reduction <add>, %241, %cst_81 [1] : vector<8x32xf32> to vector<8xf32>
    %243 = vector.shape_cast %242 : vector<8xf32> to vector<8x1xf32>
    %cst_82 = arith.constant 3.200000e+01 : f32
    %244 = vector.broadcast %cst_82 : f32 to vector<8x1xf32>
    %245 = arith.divf %243, %244 : vector<8x1xf32>
    %246 = vector.broadcast %245 : vector<8x1xf32> to vector<8x32xf32>
    %247 = arith.subf %241, %246 : vector<8x32xf32>
    %248 = arith.mulf %247, %247 : vector<8x32xf32>
    %cst_83 = arith.constant dense<0.000000e+00> : vector<8xf32>
    %249 = vector.multi_reduction <add>, %248, %cst_83 [1] : vector<8x32xf32> to vector<8xf32>
    %250 = vector.shape_cast %249 : vector<8xf32> to vector<8x1xf32>
    %cst_84 = arith.constant 3.200000e+01 : f32
    %251 = vector.broadcast %cst_84 : f32 to vector<8x1xf32>
    %252 = arith.divf %250, %251 : vector<8x1xf32>
    %cst_85 = arith.constant 9.99999974E-6 : f32
    %253 = vector.broadcast %cst_85 : f32 to vector<8x1xf32>
    %254 = arith.addf %252, %253 : vector<8x1xf32>
    %255 = math.rsqrt %254 : vector<8x1xf32>
    %256 = vector.broadcast %255 : vector<8x1xf32> to vector<8x32xf32>
    %257 = arith.mulf %247, %256 : vector<8x32xf32>
    %258 = vector.extract_strided_slice %206 {offsets = [0, 96], sizes = [8, 32], strides = [1, 1]} : vector<8x128xf32> to vector<8x32xf32>
    %cst_86 = arith.constant dense<0.000000e+00> : vector<8xf32>
    %259 = vector.multi_reduction <add>, %258, %cst_86 [1] : vector<8x32xf32> to vector<8xf32>
    %260 = vector.shape_cast %259 : vector<8xf32> to vector<8x1xf32>
    %cst_87 = arith.constant 3.200000e+01 : f32
    %261 = vector.broadcast %cst_87 : f32 to vector<8x1xf32>
    %262 = arith.divf %260, %261 : vector<8x1xf32>
    %263 = vector.broadcast %262 : vector<8x1xf32> to vector<8x32xf32>
    %264 = arith.subf %258, %263 : vector<8x32xf32>
    %265 = arith.mulf %264, %264 : vector<8x32xf32>
    %cst_88 = arith.constant dense<0.000000e+00> : vector<8xf32>
    %266 = vector.multi_reduction <add>, %265, %cst_88 [1] : vector<8x32xf32> to vector<8xf32>
    %267 = vector.shape_cast %266 : vector<8xf32> to vector<8x1xf32>
    %cst_89 = arith.constant 3.200000e+01 : f32
    %268 = vector.broadcast %cst_89 : f32 to vector<8x1xf32>
    %269 = arith.divf %267, %268 : vector<8x1xf32>
    %cst_90 = arith.constant 9.99999974E-6 : f32
    %270 = vector.broadcast %cst_90 : f32 to vector<8x1xf32>
    %271 = arith.addf %269, %270 : vector<8x1xf32>
    %272 = math.rsqrt %271 : vector<8x1xf32>
    %273 = vector.broadcast %272 : vector<8x1xf32> to vector<8x32xf32>
    %274 = arith.mulf %264, %273 : vector<8x32xf32>
    %275 = tpu.concatenate %223, %240, %257, %274 in 1 : vector<8x32xf32>, vector<8x32xf32>, vector<8x32xf32>, vector<8x32xf32> -> vector<8x128xf32>
    %276 = vector.broadcast %6 : vector<1x128xf32> to vector<8x128xf32>
    %277 = arith.mulf %275, %276 : vector<8x128xf32>
    %278 = vector.broadcast %7 : vector<1x128xf32> to vector<8x128xf32>
    %279 = arith.addf %277, %278 : vector<8x128xf32>
    %c0_91 = arith.constant 0 : index
    %c0_92 = arith.constant 0 : index
    %c0_93 = arith.constant 0 : index
    %280 = vector.load %arg6[%c0_91, %c0_92, %c0_93] : memref<1x8x128xf32, #tpu.memory_space<vmem>>, vector<1x8x128xf32>
    %281 = vector.shape_cast %280 : vector<1x8x128xf32> to vector<8x128xf32>
    %282 = vector.shape_cast %279 : vector<8x128xf32> to vector<1x8x128xf32>
    tpu.vector_store %arg6[%c0_91, %c0_92, %c0_93], %282 {strides = array<i32>} : memref<1x8x128xf32, #tpu.memory_space<vmem>>, vector<1x8x128xf32>,
    return
  }
  func.func @transform_0(%arg0: i32) -> (i32, i32, i32) {
    %c0_i32 = arith.constant 0 : i32
    %c0_i32_0 = arith.constant 0 : i32
    %c0_i32_1 = arith.constant 0 : i32
    return %arg0, %c0_i32, %c0_i32_0 : i32, i32, i32
  }
  func.func @transform_1(%arg0: i32) -> (i32, i32) {
    %c0_i32 = arith.constant 0 : i32
    %c0_i32_0 = arith.constant 0 : i32
    %c0_i32_1 = arith.constant 0 : i32
    return %c0_i32, %c0_i32_0 : i32, i32
  }
  func.func @transform_2(%arg0: i32) -> (i32, i32) {
    %c0_i32 = arith.constant 0 : i32
    %c0_i32_0 = arith.constant 0 : i32
    %c0_i32_1 = arith.constant 0 : i32
    return %c0_i32, %c0_i32_0 : i32, i32
  }
  func.func @transform_3(%arg0: i32) -> (i32, i32) {
    %c0_i32 = arith.constant 0 : i32
    %c0_i32_0 = arith.constant 0 : i32
    %c0_i32_1 = arith.constant 0 : i32
    return %c0_i32, %c0_i32_0 : i32, i32
  }
  func.func @transform_4(%arg0: i32) -> (i32, i32) {
    %c0_i32 = arith.constant 0 : i32
    %c0_i32_0 = arith.constant 0 : i32
    %c0_i32_1 = arith.constant 0 : i32
    return %c0_i32, %c0_i32_0 : i32, i32
  }
  func.func @transform_5(%arg0: i32) -> (i32, i32, i32) {
    %c0_i32 = arith.constant 0 : i32
    %c0_i32_0 = arith.constant 0 : i32
    %c0_i32_1 = arith.constant 0 : i32
    return %arg0, %c0_i32, %c0_i32_0 : i32, i32, i32
  }
}

</mosaic_0001>

<llo_original>
// kernel: encoder_layer_two.1
$region0: #{encoder_layer_two.1}
  #allocation0 [shape = 'u32[]', space=smem, size = 0x4, offset = 0x4, fixed_abs, tag = 'smem constant byte address 0x4 - core index']
  #allocation1 [shape = 'u32[144,128]{1,0:T(1,128)}', space=vmem, size = 0x12000, scoped, tag = 'internal scratch']
  %s0 = inlined_call_operand.vmem [shape: f32[4,8,128], index: 0, kind: input, shape index: {}]
  %s1 = inlined_call_operand.vmem [shape: f32[128,384], index: 1, kind: input, shape index: {}]
  %s2 = inlined_call_operand.hbm [shape: f32[8,256], index: 2, kind: input, shape index: {}]
  %s3 = inlined_call_operand.vmem [shape: f32[264,128], index: 3, kind: input, shape index: {}]
  %s4 = inlined_call_operand.vmem [shape: f32[40,32], index: 4, kind: input, shape index: {}]
  %s5 = inlined_call_operand.vmem [shape: f32[4,8,128], index: 5, kind: output, shape index: {}]
  %s6 = sld [smem:[#allocation0]]
  $region57: #{encoder_layer_two.1} parent=0
    _
  %s8 = ssub.s32 1, %s6
  %s9 = scalar_select 0, %s8, %s6
  $region1: #{encoder_layer_two.1} parent=0
    #allocation2 [shape = 'u8[8192]{0}', space=vmem, size = 0x2000, scoped, tag = 'input window, operand 2, single buffered']
    #allocation3 [shape = 's32[2]{0}', space=sflag, size = 0x8, scoped, tag = 'scoped memory for encoder_layer_two.1']
    %10 = vsyncpa [#allocation3], 0
    loop: start=0, step=1, limit=6
    $region2: #{encoder_layer_two.1} parent=1 // loop_pre_header
      _
    $region3: #{encoder_layer_two.1} parent=1 // loop_header
      %s12 = sphi 0, %s16
      %p13 = scmp.ge.s32.totalorder %s12, 6
      %s22 = sphi 0, %s24
      %s25 = sphi 0, %s22
      %s26 = sphi 0, %s25
      %s42 = sphi 0, %s26
      %s46 = sphi 0, %s46
      %s48 = sphi 0, %s46
      %s49 = sphi 0, %s48
      %s63 = sphi 0, %s49
      %s67 = sphi 0, %s67
      %s69 = sphi 0, %s67
      %s70 = sphi 0, %s69
      %s84 = sphi 0, %s70
      %s88 = sphi 0, %s88
      %s90 = sphi 0, %s88
      %s91 = sphi 0, %s90
      %s105 = sphi 0, %s91
      %s109 = sphi 0, %s109
      %s111 = sphi 0, %s109
      %s112 = sphi 0, %s111
      %s126 = sphi 0, %s112
      %s132 = sphi 0, %s134
      %s135 = sphi 0, %s132
      %s136 = sphi 0, %s135
      %s152 = sphi 0, %s136
    $region4: #{encoder_layer_two.1} parent=1 // loop_header_branch
      %15 = sbr.rel (%p13) target = $region8
    $region5: #{encoder_layer_two.1} parent=1 // loop_body
      %s17 = ssub.s32 %s12, 1
      %s18 = ssub.s32 %s12, 2
      %s19 = sadd.s32 %s12, 1
      %s20 = ssub.s32 %s12, %s19
      %p21 = scmp.eq.s32.totalorder %s20, 0
      %s23 = sadd.s32 %s22, 1
      %s24 = scalar_select %p21, %s22, %s23
      %p27 = pneg %p21
      %p28 = scmp.eq.s32.totalorder %s12, 3
      %p29 = por %p27, %p28
      %p30 = scmp.ne.s32.totalorder %s22, %s25
      %p31 = scmp.eq.s32.totalorder %s12, 0
      %p32 = por %p30, %p31
      %p33 = scmp.ne.s32.totalorder %s22, %s25
      %p34 = scmp.eq.s32.totalorder %s17, 3
      %p35 = por %p33, %p34
      %p36 = scmp.ne.s32.totalorder %s25, %s26
      %p37 = scmp.eq.s32.totalorder %s17, 0
      %p38 = por %p36, %p37
      %p39 = scmp.ne.s32.totalorder %s25, %s26
      %p40 = scmp.eq.s32.totalorder %s18, 3
      %p41 = por %p39, %p40
      %p43 = scmp.ne.s32.totalorder %s26, %s42
      %p44 = scmp.eq.s32.totalorder %s18, 0
      %p45 = por %p43, %p44
      %s47 = sadd.s32 %s46, 1
      %p50 = scmp.eq.s32.totalorder %s12, 3
      %p51 = scmp.ne.s32.totalorder %s46, %s48
      %p52 = scmp.eq.s32.totalorder %s12, 0
      %p53 = por %p51, %p52
      %p54 = scmp.ne.s32.totalorder %s46, %s48
      %p55 = scmp.eq.s32.totalorder %s17, 3
      %p56 = por %p54, %p55
      %p57 = scmp.ne.s32.totalorder %s48, %s49
      %p58 = scmp.eq.s32.totalorder %s17, 0
      %p59 = por %p57, %p58
      %p60 = scmp.ne.s32.totalorder %s48, %s49
      %p61 = scmp.eq.s32.totalorder %s18, 3
      %p62 = por %p60, %p61
      %p64 = scmp.ne.s32.totalorder %s49, %s63
      %p65 = scmp.eq.s32.totalorder %s18, 0
      %p66 = por %p64, %p65
      %s68 = sadd.s32 %s67, 1
      %p71 = scmp.eq.s32.totalorder %s12, 3
      %p72 = scmp.ne.s32.totalorder %s67, %s69
      %p73 = scmp.eq.s32.totalorder %s12, 0
      %p74 = por %p72, %p73
      %p75 = scmp.ne.s32.totalorder %s67, %s69
      %p76 = scmp.eq.s32.totalorder %s17, 3
      %p77 = por %p75, %p76
      %p78 = scmp.ne.s32.totalorder %s69, %s70
      %p79 = scmp.eq.s32.totalorder %s17, 0
      %p80 = por %p78, %p79
      %p81 = scmp.ne.s32.totalorder %s69, %s70
      %p82 = scmp.eq.s32.totalorder %s18, 3
      %p83 = por %p81, %p82
      %p85 = scmp.ne.s32.totalorder %s70, %s84
      %p86 = scmp.eq.s32.totalorder %s18, 0
      %p87 = por %p85, %p86
      %s89 = sadd.s32 %s88, 1
      %p92 = scmp.eq.s32.totalorder %s12, 3
      %p93 = scmp.ne.s32.totalorder %s88, %s90
      %p94 = scmp.eq.s32.totalorder %s12, 0
      %p95 = por %p93, %p94
      %p96 = scmp.ne.s32.totalorder %s88, %s90
      %p97 = scmp.eq.s32.totalorder %s17, 3
      %p98 = por %p96, %p97
      %p99 = scmp.ne.s32.totalorder %s90, %s91
      %p100 = scmp.eq.s32.totalorder %s17, 0
      %p101 = por %p99, %p100
      %p102 = scmp.ne.s32.totalorder %s90, %s91
      %p103 = scmp.eq.s32.totalorder %s18, 3
      %p104 = por %p102, %p103
      %p106 = scmp.ne.s32.totalorder %s91, %s105
      %p107 = scmp.eq.s32.totalorder %s18, 0
      %p108 = por %p106, %p107
      %s110 = sadd.s32 %s109, 1
      %p113 = scmp.eq.s32.totalorder %s12, 3
      %p114 = scmp.ne.s32.totalorder %s109, %s111
      %p115 = scmp.eq.s32.totalorder %s12, 0
      %p116 = por %p114, %p115
      %p117 = scmp.ne.s32.totalorder %s109, %s111
      %p118 = scmp.eq.s32.totalorder %s17, 3
      %p119 = por %p117, %p118
      %p120 = scmp.ne.s32.totalorder %s111, %s112
      %p121 = scmp.eq.s32.totalorder %s17, 0
      %p122 = por %p120, %p121
      %p123 = scmp.ne.s32.totalorder %s111, %s112
      %p124 = scmp.eq.s32.totalorder %s18, 3
      %p125 = por %p123, %p124
      %p127 = scmp.ne.s32.totalorder %s112, %s126
      %p128 = scmp.eq.s32.totalorder %s18, 0
      %p129 = por %p127, %p128
      %s130 = ssub.s32 %s12, %s19
      %p131 = scmp.eq.s32.totalorder %s130, 0
      %s133 = sadd.s32 %s132, 1
      %s134 = scalar_select %p131, %s132, %s133
      %p137 = pneg %p131
      %p138 = scmp.eq.s32.totalorder %s12, 3
      %p139 = por %p137, %p138
      %p140 = scmp.ne.s32.totalorder %s132, %s135
      %p141 = scmp.eq.s32.totalorder %s12, 0
      %p142 = por %p140, %p141
      %p143 = scmp.ne.s32.totalorder %s132, %s135
      %p144 = scmp.eq.s32.totalorder %s17, 3
      %p145 = por %p143, %p144
      %p146 = scmp.ne.s32.totalorder %s135, %s136
      %p147 = scmp.eq.s32.totalorder %s17, 0
      %p148 = por %p146, %p147
      %p149 = scmp.ne.s32.totalorder %s135, %s136
      %p150 = scmp.eq.s32.totalorder %s18, 3
      %p151 = por %p149, %p150
      %p153 = scmp.ne.s32.totalorder %s136, %s152
      %p154 = scmp.eq.s32.totalorder %s18, 0
      %p155 = por %p153, %p154
      %p156 = scmp.le.s32.totalorder 1, %s12
      %p157 = scmp.lt.s32.totalorder %s12, 5
      %p158 = pnand %p156, %p157
      %p159 = pneg %p158
      // Predicated region
      $region9: #{encoder_layer_two.1} parent=5 // pred_check
        _
      $region10: #{encoder_layer_two.1} parent=5 // pred_check_branch
        %161 = sbr.rel (%p158) target = $region12
      $region11: #{encoder_layer_two.1} parent=5 // pred_region
        %s162 = ssub.s32 %s12, 1
        // Predicated region
        $region13: #{encoder_layer_two.1} parent=11 // pred_check
          %p163 = pneg %p59
        $region14: #{encoder_layer_two.1} parent=11 // pred_check_branch
          %165 = sbr.rel (%p163) target = $region16
        $region15: #{encoder_layer_two.1} parent=11 // pred_region
          _
        $region16: #{encoder_layer_two.1} parent=11 // pred_fallthru
          _
        // Predicated region
        $region17: #{encoder_layer_two.1} parent=11 // pred_check
          %p166 = pneg %p80
        $region18: #{encoder_layer_two.1} parent=11 // pred_check_branch
          %168 = sbr.rel (%p166) target = $region20
        $region19: #{encoder_layer_two.1} parent=11 // pred_region
          %s170 = ssub.s32 256, 256
          %171 = vsyncadd [#allocation3], %s170
          %s173 = sshll.u32 [#allocation2], 4
          %s174 = int_to_ptr.vmem [resolvable:$true] %s173
          %176 = dma.hbm_to_vmem [thread:$0]  %s2, 256, %s174, [#allocation3]
        $region20: #{encoder_layer_two.1} parent=11 // pred_fallthru
          _
        // Predicated region
        $region21: #{encoder_layer_two.1} parent=11 // pred_check
          %p177 = pneg %p101
        $region22: #{encoder_layer_two.1} parent=11 // pred_check_branch
          %179 = sbr.rel (%p177) target = $region24
        $region23: #{encoder_layer_two.1} parent=11 // pred_region
          _
        $region24: #{encoder_layer_two.1} parent=11 // pred_fallthru
          _
        // Predicated region
        $region25: #{encoder_layer_two.1} parent=11 // pred_check
          %p180 = pneg %p122
        $region26: #{encoder_layer_two.1} parent=11 // pred_check_branch
          %182 = sbr.rel (%p180) target = $region28
        $region27: #{encoder_layer_two.1} parent=11 // pred_region
          _
        $region28: #{encoder_layer_two.1} parent=11 // pred_fallthru
          _
      $region12: #{encoder_layer_two.1} parent=5 // pred_fallthru
        _
      %p183 = scmp.lt.s32.totalorder %s12, 4
      // Predicated region
      $region29: #{encoder_layer_two.1} parent=5 // pred_check
        %p184 = pneg %p183
      $region30: #{encoder_layer_two.1} parent=5 // pred_check_branch
        %186 = sbr.rel (%p184) target = $region32
      $region31: #{encoder_layer_two.1} parent=5 // pred_region
        // Predicated region
        $region33: #{encoder_layer_two.1} parent=31 // pred_check
          %p187 = pneg %p32
        $region34: #{encoder_layer_two.1} parent=31 // pred_check_branch
          %189 = sbr.rel (%p187) target = $region36
        $region35: #{encoder_layer_two.1} parent=31 // pred_region
          %p190 = scmp.lt.s32.totalorder %s12, 3
          %s191 = scalar_select %p190, %s12, 3
          %s192 = smul.addr %s191, 8
          %s193 = scalar_lea.vmem %s0, %s192
        $region36: #{encoder_layer_two.1} parent=31 // pred_fallthru
          _
      $region32: #{encoder_layer_two.1} parent=5 // pred_fallthru
        _
      %p194 = scmp.le.s32.totalorder 1, %s12
      %p195 = scmp.lt.s32.totalorder %s12, 5
      %p196 = pnand %p194, %p195
      %p197 = pneg %p196
      // Predicated region
      $region37: #{encoder_layer_two.1} parent=5 // pred_check
        _
      $region38: #{encoder_layer_two.1} parent=5 // pred_check_branch
        %199 = sbr.rel (%p196) target = $region40
      $region39: #{encoder_layer_two.1} parent=5 // pred_region
        %s200 = ssub.s32 %s12, 1
        // Predicated region
        $region41: #{encoder_layer_two.1} parent=39 // pred_check
          %p201 = pneg %p80
        $region42: #{encoder_layer_two.1} parent=39 // pred_check_branch
          %203 = sbr.rel (%p201) target = $region44
        $region43: #{encoder_layer_two.1} parent=39 // pred_region
          %204 = dma.done [#allocation3], 256
        $region44: #{encoder_layer_two.1} parent=39 // pred_fallthru
          _
        %p205 = scmp.lt.s32.totalorder %s17, 3
        %s206 = scalar_select %p205, %s17, 3
        %s207 = smul.addr %s206, 8
        %s208 = scalar_lea.vmem %s0, %s207
        %p209 = pneg %p38
        %p210 = pneg %p35
        %p211 = pneg %p59
        %p212 = pneg %p56
        %p213 = pneg %p80
        %p214 = pneg %p77
        %p215 = pneg %p101
        %p216 = pneg %p98
        %p217 = pneg %p122
        %p218 = pneg %p119
        %p219 = pneg %p148
        %p220 = pneg %p145
        %p221 = scmp.lt.s32.totalorder %s17, 3
        %s222 = scalar_select %p221, %s17, 3
        %s223 = smul.addr %s222, 8
        %s224 = scalar_lea.vmem %s5, %s223
        %p225 = scmp.lt.s32.totalorder %s17, 3
        %s226 = scalar_select %p225, %s17, 3
        %s227 = smul.addr %s226, 8
        %s228 = scalar_lea.vmem %s0, %s227
        %p229 = scmp.lt.s32.totalorder %s17, 3
        %s230 = scalar_select %p229, %s17, 3
        %s231 = smul.addr %s230, 8
        %s232 = scalar_lea.vmem %s5, %s231
        %v233 = vld [vmem:[%s228] sm:$0xff]
        %v234 = vld [vmem:[%s3] sm:$0xff]
        %v235 = vld [vmem:[%s3 + $0x8] sm:$0xff]
        %v236 = vld [vmem:[%s3 + $0x10] sm:$0xff]
        %v237 = vld [vmem:[%s3 + $0x18] sm:$0xff]
        %v238 = vld [vmem:[%s3 + $0x20] sm:$0xff]
        %v239 = vld [vmem:[%s3 + $0x28] sm:$0xff]
        %v240 = vld [vmem:[%s3 + $0x30] sm:$0xff]
        %v241 = vld [vmem:[%s3 + $0x38] sm:$0xff]
        %v242 = vld [vmem:[%s3 + $0x40] sm:$0xff]
        %v243 = vld [vmem:[%s3 + $0x48] sm:$0xff]
        %v244 = vld [vmem:[%s3 + $0x50] sm:$0xff]
        %v245 = vld [vmem:[%s3 + $0x58] sm:$0xff]
        %v246 = vld [vmem:[%s3 + $0x60] sm:$0xff]
        %v247 = vld [vmem:[%s3 + $0x68] sm:$0xff]
        %v248 = vld [vmem:[%s3 + $0x70] sm:$0xff]
        %v249 = vld [vmem:[%s3 + $0x78] sm:$0xff]
        %v250 = vld [vmem:[%s3 + $0x80] sm:$0xff]
        %v251 = vld [vmem:[%s3 + $0x88] sm:$0xff]
        %v252 = vld [vmem:[%s3 + $0x90] sm:$0xff]
        %v253 = vld [vmem:[%s3 + $0x98] sm:$0xff]
        %v254 = vld [vmem:[%s3 + $0xa0] sm:$0xff]
        %v255 = vld [vmem:[%s3 + $0xa8] sm:$0xff]
        %v256 = vld [vmem:[%s3 + $0xb0] sm:$0xff]
        %v257 = vld [vmem:[%s3 + $0xb8] sm:$0xff]
        %v258 = vld [vmem:[%s3 + $0xc0] sm:$0xff]
        %v259 = vld [vmem:[%s3 + $0xc8] sm:$0xff]
        %v260 = vld [vmem:[%s3 + $0xd0] sm:$0xff]
        %v261 = vld [vmem:[%s3 + $0xd8] sm:$0xff]
        %v262 = vld [vmem:[%s3 + $0xe0] sm:$0xff]
        %v263 = vld [vmem:[%s3 + $0xe8] sm:$0xff]
        %v264 = vld [vmem:[%s3 + $0xf0] sm:$0xff]
        %v265 = vld [vmem:[%s3 + $0xf8] sm:$0xff]
        %v266 = vld [vmem:[%s3 + $0x100] sm:$0x1]
        %v267 = vld [vmem:[%s3 + $0x101] sm:$0x1]
        %v268 = vld [vmem:[%s3 + $0x102] sm:$0x1]
        %v269 = vld [vmem:[%s3 + $0x103] sm:$0x1]
        %v270 = vld [vmem:[%s3 + $0x104] sm:$0x1]
        %v271 = vld [vmem:[%s4] sm:$0xff]
        %v272 = vld [vmem:[%s1] sm:$0xff]
        %v273 = vld [vmem:[%s1 + $0x8] sm:$0xff]
        %v274 = vld [vmem:[%s1 + $0x10] sm:$0xff]
        %v275 = vld [vmem:[%s1 + $0x18] sm:$0xff]
        %v276 = vld [vmem:[%s1 + $0x20] sm:$0xff]
        %v277 = vld [vmem:[%s1 + $0x28] sm:$0xff]
        %v278 = vld [vmem:[%s1 + $0x30] sm:$0xff]
        %v279 = vld [vmem:[%s1 + $0x38] sm:$0xff]
        %v280 = vld [vmem:[%s1 + $0x40] sm:$0xff]
        %v281 = vld [vmem:[%s1 + $0x48] sm:$0xff]
        %v282 = vld [vmem:[%s1 + $0x50] sm:$0xff]
        %v283 = vld [vmem:[%s1 + $0x58] sm:$0xff]
        %v284 = vld [vmem:[%s1 + $0x60] sm:$0xff]
        %v285 = vld [vmem:[%s1 + $0x68] sm:$0xff]
        %v286 = vld [vmem:[%s1 + $0x70] sm:$0xff]
        %v287 = vld [vmem:[%s1 + $0x78] sm:$0xff]
        %v288 = vld [vmem:[%s1 + $0x80] sm:$0xff]
        %v289 = vld [vmem:[%s1 + $0x88] sm:$0xff]
        %v290 = vld [vmem:[%s1 + $0x90] sm:$0xff]
        %v291 = vld [vmem:[%s1 + $0x98] sm:$0xff]
        %v292 = vld [vmem:[%s1 + $0xa0] sm:$0xff]
        %v293 = vld [vmem:[%s1 + $0xa8] sm:$0xff]
        %v294 = vld [vmem:[%s1 + $0xb0] sm:$0xff]
        %v295 = vld [vmem:[%s1 + $0xb8] sm:$0xff]
        %v296 = vld [vmem:[%s1 + $0xc0] sm:$0xff]
        %v297 = vld [vmem:[%s1 + $0xc8] sm:$0xff]
        %v298 = vld [vmem:[%s1 + $0xd0] sm:$0xff]
        %v299 = vld [vmem:[%s1 + $0xd8] sm:$0xff]
        %v300 = vld [vmem:[%s1 + $0xe0] sm:$0xff]
        %v301 = vld [vmem:[%s1 + $0xe8] sm:$0xff]
        %v302 = vld [vmem:[%s1 + $0xf0] sm:$0xff]
        %v303 = vld [vmem:[%s1 + $0xf8] sm:$0xff]
        %v304 = vld [vmem:[%s1 + $0x100] sm:$0xff]
        %v305 = vld [vmem:[%s1 + $0x108] sm:$0xff]
        %v306 = vld [vmem:[%s1 + $0x110] sm:$0xff]
        %v307 = vld [vmem:[%s1 + $0x118] sm:$0xff]
        %v308 = vld [vmem:[%s1 + $0x120] sm:$0xff]
        %v309 = vld [vmem:[%s1 + $0x128] sm:$0xff]
        %v310 = vld [vmem:[%s1 + $0x130] sm:$0xff]
        %v311 = vld [vmem:[%s1 + $0x138] sm:$0xff]
        %v312 = vld [vmem:[%s1 + $0x140] sm:$0xff]
        %v313 = vld [vmem:[%s1 + $0x148] sm:$0xff]
        %v314 = vld [vmem:[%s1 + $0x150] sm:$0xff]
        %v315 = vld [vmem:[%s1 + $0x158] sm:$0xff]
        %v316 = vld [vmem:[%s1 + $0x160] sm:$0xff]
        %v317 = vld [vmem:[%s1 + $0x168] sm:$0xff]
        %v318 = vld [vmem:[%s1 + $0x170] sm:$0xff]
        %v319 = vld [vmem:[%s1 + $0x178] sm:$0xff]
        %320 = vmatprep.subr.mxu0 %v273
        %321 = vmatpush1.msra.mxu0 %v272
        %322 = vmatprep.subr.mxu0 %v276
        %323 = vmatpush1.msra.mxu0 %v275
        %324 = vmatprep.subr.mxu0 %v279
        %325 = vmatpush1.msra.mxu0 %v278
        %326 = vmatprep.subr.mxu0 %v282
        %327 = vmatpush1.msra.mxu0 %v281
        %328 = vmatprep.subr.mxu0 %v285
        %329 = vmatpush1.msra.mxu0 %v284
        %330 = vmatprep.subr.mxu0 %v288
        %331 = vmatpush1.msra.mxu0 %v287
        %332 = vmatprep.subr.mxu0 %v291
        %333 = vmatpush1.msra.mxu0 %v290
        %334 = vmatprep.subr.mxu0 %v294
        %335 = vmatpush1.msra.mxu0 %v293
        %336 = vmatprep.subr.mxu0 %v297
        %337 = vmatpush1.msra.mxu0 %v296
        %338 = vmatprep.subr.mxu0 %v300
        %339 = vmatpush1.msra.mxu0 %v299
        %340 = vmatprep.subr.mxu0 %v303
        %341 = vmatpush1.msra.mxu0 %v302
        %342 = vmatprep.subr.mxu0 %v306
        %343 = vmatpush1.msra.mxu0 %v305
        %344 = vmatprep.subr.mxu0 %v309
        %345 = vmatpush1.msra.mxu0 %v308
        %346 = vmatprep.subr.mxu0 %v312
        %347 = vmatpush1.msra.mxu0 %v311
        %348 = vmatprep.subr.mxu0 %v315
        %349 = vmatpush1.msra.mxu0 %v314
        %350 = vmatprep.subr.mxu0 %v318
        %351 = vmatpush1.msra.mxu0 %v317
        %352 = vmatprep.subr.mxu0 0.0
        %353 = vmatpush1.msra.mxu0 0.0
        %354 = vmatprep.subr.mxu0 0.0
        %355 = vmatpush1.msra.mxu0 0.0
        %356 = vmatprep.subr.mxu0 0.0
        %357 = vmatpush1.msra.mxu0 0.0
        %358 = vmatprep.subr.mxu0 0.0
        %359 = vmatpush1.msra.mxu0 0.0
        %360 = vmatprep.subr.mxu0 0.0
        %361 = vmatpush1.msra.mxu0 0.0
        %362 = vmatprep.subr.mxu0 0.0
        %363 = vmatpush1.msra.mxu0 0.0
        %364 = vmatprep.subr.mxu0 0.0
        %365 = vmatpush1.msra.mxu0 0.0
        %366 = vmatprep.subr.mxu0 0.0
        %367 = vmatpush1.msra.mxu0 0.0
        %368 = vmatprep.subr.mxu0 0.0
        %369 = vmatpush1.msra.mxu0 0.0
        %370 = vmatprep.subr.mxu0 0.0
        %371 = vmatpush1.msra.mxu0 0.0
        %372 = vmatprep.subr.mxu0 0.0
        %373 = vmatpush1.msra.mxu0 0.0
        %374 = vmatprep.subr.mxu0 0.0
        %375 = vmatpush1.msra.mxu0 0.0
        %376 = vmatprep.subr.mxu0 0.0
        %377 = vmatpush1.msra.mxu0 0.0
        %378 = vmatprep.subr.mxu0 0.0
        %379 = vmatpush1.msra.mxu0 0.0
        %380 = vmatprep.subr.mxu0 0.0
        %381 = vmatpush1.msra.mxu0 0.0
        %382 = vmatprep.subr.mxu0 0.0
        %383 = vmatpush1.msra.mxu0 0.0
        %384 = vmatprep.mubr.f32.mxu0 0.0
        %385 = vmatmul.mubr.f32.gmra.mrb[0].mxu0 %v233
        %v386 = vpop.f32.mrb[0].mxu0
        %v387 = vadd.f32 0.0, %v386
        %v388 = vpop.f32.mrb[0].mxu0
        %v389 = vadd.f32 0.0, %v388
        %390 = vdwg.mxu0
        %391 = vmatprep.subr.mxu0 0.0
        %392 = vmatpush1.msra.mxu0 %v274
        %393 = vmatprep.subr.mxu0 0.0
        %394 = vmatpush1.msra.mxu0 %v277
        %395 = vmatprep.subr.mxu0 0.0
        %396 = vmatpush1.msra.mxu0 %v280
        %397 = vmatprep.subr.mxu0 0.0
        %398 = vmatpush1.msra.mxu0 %v283
        %399 = vmatprep.subr.mxu0 0.0
        %400 = vmatpush1.msra.mxu0 %v286
        %401 = vmatprep.subr.mxu0 0.0
        %402 = vmatpush1.msra.mxu0 %v289
        %403 = vmatprep.subr.mxu0 0.0
        %404 = vmatpush1.msra.mxu0 %v292
        %405 = vmatprep.subr.mxu0 0.0
        %406 = vmatpush1.msra.mxu0 %v295
        %407 = vmatprep.subr.mxu0 0.0
        %408 = vmatpush1.msra.mxu0 %v298
        %409 = vmatprep.subr.mxu0 0.0
        %410 = vmatpush1.msra.mxu0 %v301
        %411 = vmatprep.subr.mxu0 0.0
        %412 = vmatpush1.msra.mxu0 %v304
        %413 = vmatprep.subr.mxu0 0.0
        %414 = vmatpush1.msra.mxu0 %v307
        %415 = vmatprep.subr.mxu0 0.0
        %416 = vmatpush1.msra.mxu0 %v310
        %417 = vmatprep.subr.mxu0 0.0
        %418 = vmatpush1.msra.mxu0 %v313
        %419 = vmatprep.subr.mxu0 0.0
        %420 = vmatpush1.msra.mxu0 %v316
        %421 = vmatprep.subr.mxu0 0.0
        %422 = vmatpush1.msra.mxu0 %v319
        %423 = vmatprep.subr.mxu0 0.0
        %424 = vmatpush1.msra.mxu0 0.0
        %425 = vmatprep.subr.mxu0 0.0
        %426 = vmatpush1.msra.mxu0 0.0
        %427 = vmatprep.subr.mxu0 0.0
        %428 = vmatpush1.msra.mxu0 0.0
        %429 = vmatprep.subr.mxu0 0.0
        %430 = vmatpush1.msra.mxu0 0.0
        %431 = vmatprep.subr.mxu0 0.0
        %432 = vmatpush1.msra.mxu0 0.0
        %433 = vmatprep.subr.mxu0 0.0
        %434 = vmatpush1.msra.mxu0 0.0
        %435 = vmatprep.subr.mxu0 0.0
        %436 = vmatpush1.msra.mxu0 0.0
        %437 = vmatprep.subr.mxu0 0.0
        %438 = vmatpush1.msra.mxu0 0.0
        %439 = vmatprep.subr.mxu0 0.0
        %440 = vmatpush1.msra.mxu0 0.0
        %441 = vmatprep.subr.mxu0 0.0
        %442 = vmatpush1.msra.mxu0 0.0
        %443 = vmatprep.subr.mxu0 0.0
        %444 = vmatpush1.msra.mxu0 0.0
        %445 = vmatprep.subr.mxu0 0.0
        %446 = vmatpush1.msra.mxu0 0.0
        %447 = vmatprep.subr.mxu0 0.0
        %448 = vmatpush1.msra.mxu0 0.0
        %449 = vmatprep.subr.mxu0 0.0
        %450 = vmatpush1.msra.mxu0 0.0
        %451 = vmatprep.subr.mxu0 0.0
        %452 = vmatpush1.msra.mxu0 0.0
        %453 = vmatprep.subr.mxu0 0.0
        %454 = vmatpush1.msra.mxu0 0.0
        %455 = vmatprep.mubr.f32.mxu0 0.0
        %456 = vmatmul.mubr.f32.gmra.mrb[0].mxu0 %v233
        %v457 = vpop.f32.mrb[0].mxu0
        %v458 = vadd.f32 0.0, %v457
        %v459 = vpop.f32.mrb[0].mxu0
        %460 = vdwg.mxu0
        %v461 = vmul.f32 %v387, %v250
        %v462 = vmul.f32 %v387, %v251
        %v463 = vmul.f32 %v387, %v252
        %v464 = vmul.f32 %v387, %v253
        %v465 = vmul.f32 %v387, %v254
        %v466 = vmul.f32 %v387, %v255
        %v467 = vmul.f32 %v387, %v256
        %v468 = vmul.f32 %v387, %v257
        %v469 = vmul.f32 %v387, %v258
        %v470 = vmul.f32 %v387, %v259
        %v471 = vmul.f32 %v387, %v260
        %v472 = vmul.f32 %v387, %v261
        %v473 = vmul.f32 %v387, %v262
        %v474 = vmul.f32 %v387, %v263
        %v475 = vmul.f32 %v387, %v264
        %v476 = vmul.f32 %v387, %v265
        %477 = vmatprep.subr.mxu0 0.0
        %478 = vmatpush1.xpose.msra.mxu0 %v389
        %479 = vmatprep.subr.mxu0 0.0
        %480 = vmatpush1.xpose.msra.mxu0 0.0
        %481 = vmatprep.subr.mxu0 0.0
        %482 = vmatpush1.xpose.msra.mxu0 0.0
        %483 = vmatprep.subr.mxu0 0.0
        %484 = vmatpush1.xpose.msra.mxu0 0.0
        %485 = vmatprep.subr.mxu0 0.0
        %486 = vmatpush1.xpose.msra.mxu0 0.0
        %487 = vmatprep.subr.mxu0 0.0
        %488 = vmatpush1.xpose.msra.mxu0 0.0
        %489 = vmatprep.subr.mxu0 0.0
        %490 = vmatpush1.xpose.msra.mxu0 0.0
        %491 = vmatprep.subr.mxu0 0.0
        %492 = vmatpush1.xpose.msra.mxu0 0.0
        %493 = vmatprep.subr.mxu0 0.0
        %494 = vmatpush1.xpose.msra.mxu0 0.0
        %495 = vmatprep.subr.mxu0 0.0
        %496 = vmatpush1.xpose.msra.mxu0 0.0
        %497 = vmatprep.subr.mxu0 0.0
        %498 = vmatpush1.xpose.msra.mxu0 0.0
        %499 = vmatprep.subr.mxu0 0.0
        %500 = vmatpush1.xpose.msra.mxu0 0.0
        %501 = vmatprep.subr.mxu0 0.0
        %502 = vmatpush1.xpose.msra.mxu0 0.0
        %503 = vmatprep.subr.mxu0 0.0
        %504 = vmatpush1.xpose.msra.mxu0 0.0
        %505 = vmatprep.subr.mxu0 0.0
        %506 = vmatpush1.xpose.msra.mxu0 0.0
        %507 = vmatprep.subr.mxu0 0.0
        %508 = vmatpush1.xpose.msra.mxu0 0.0
        %509 = vmatprep.subr.mxu0 0.0
        %510 = vmatpush1.xpose.msra.mxu0 0.0
        %511 = vmatprep.subr.mxu0 0.0
        %512 = vmatpush1.xpose.msra.mxu0 0.0
        %513 = vmatprep.subr.mxu0 0.0
        %514 = vmatpush1.xpose.msra.mxu0 0.0
        %515 = vmatprep.subr.mxu0 0.0
        %516 = vmatpush1.xpose.msra.mxu0 0.0
        %517 = vmatprep.subr.mxu0 0.0
        %518 = vmatpush1.xpose.msra.mxu0 0.0
        %519 = vmatprep.subr.mxu0 0.0
        %520 = vmatpush1.xpose.msra.mxu0 0.0
        %521 = vmatprep.subr.mxu0 0.0
        %522 = vmatpush1.xpose.msra.mxu0 0.0
        %523 = vmatprep.subr.mxu0 0.0
        %524 = vmatpush1.xpose.msra.mxu0 0.0
        %525 = vmatprep.subr.mxu0 0.0
        %526 = vmatpush1.xpose.msra.mxu0 0.0
        %527 = vmatprep.subr.mxu0 0.0
        %528 = vmatpush1.xpose.msra.mxu0 0.0
        %529 = vmatprep.subr.mxu0 0.0
        %530 = vmatpush1.xpose.msra.mxu0 0.0
        %531 = vmatprep.subr.mxu0 0.0
        %532 = vmatpush1.xpose.msra.mxu0 0.0
        %533 = vmatprep.subr.mxu0 0.0
        %534 = vmatpush1.xpose.msra.mxu0 0.0
        %535 = vmatprep.subr.mxu0 0.0
        %536 = vmatpush1.xpose.msra.mxu0 0.0
        %537 = vmatprep.subr.mxu0 0.0
        %538 = vmatpush1.xpose.msra.mxu0 0.0
        %539 = vmatprep.subr.mxu0 0.0
        %540 = vmatpush1.xpose.msra.mxu0 0.0
        %541 = vmatprep.mubr.f32.mxu0 0.0
        %542 = vmatmul.mubr.f32.gmra.mrb[0].mxu0 %v461
        %v543 = vpop.f32.mrb[0].mxu0
        %v544 = vadd.f32 0.0, %v543
        %v545 = vpop.f32.mrb[0].mxu0
        %546 = vmatprep.mubr.f32.mxu0 0.0
        %547 = vmatmul.mubr.f32.gmra.mrb[0].mxu0 %v462
        %v548 = vpop.f32.mrb[0].mxu0
        %v549 = vadd.f32 0.0, %v548
        %v550 = vpop.f32.mrb[0].mxu0
        %551 = vmatprep.mubr.f32.mxu0 0.0
        %552 = vmatmul.mubr.f32.gmra.mrb[0].mxu0 %v463
        %v553 = vpop.f32.mrb[0].mxu0
        %v554 = vadd.f32 0.0, %v553
        %v555 = vpop.f32.mrb[0].mxu0
        %556 = vmatprep.mubr.f32.mxu0 0.0
        %557 = vmatmul.mubr.f32.gmra.mrb[0].mxu0 %v464
        %v558 = vpop.f32.mrb[0].mxu0
        %v559 = vadd.f32 0.0, %v558
        %v560 = vpop.f32.mrb[0].mxu0
        %561 = vmatprep.mubr.f32.mxu0 0.0
        %562 = vmatmul.mubr.f32.gmra.mrb[0].mxu0 %v465
        %v563 = vpop.f32.mrb[0].mxu0
        %v564 = vadd.f32 0.0, %v563
        %v565 = vpop.f32.mrb[0].mxu0
        %566 = vmatprep.mubr.f32.mxu0 0.0
        %567 = vmatmul.mubr.f32.gmra.mrb[0].mxu0 %v466
        %v568 = vpop.f32.mrb[0].mxu0
        %v569 = vadd.f32 0.0, %v568
        %v570 = vpop.f32.mrb[0].mxu0
        %571 = vmatprep.mubr.f32.mxu0 0.0
        %572 = vmatmul.mubr.f32.gmra.mrb[0].mxu0 %v467
        %v573 = vpop.f32.mrb[0].mxu0
        %v574 = vadd.f32 0.0, %v573
        %v575 = vpop.f32.mrb[0].mxu0
        %576 = vmatprep.mubr.f32.mxu0 0.0
        %577 = vmatmul.mubr.f32.gmra.mrb[0].mxu0 %v468
        %v578 = vpop.f32.mrb[0].mxu0
        %v579 = vadd.f32 0.0, %v578
        %v580 = vpop.f32.mrb[0].mxu0
        %581 = vmatprep.mubr.f32.mxu0 0.0
        %582 = vmatmul.mubr.f32.gmra.mrb[0].mxu0 %v469
        %v583 = vpop.f32.mrb[0].mxu0
        %v584 = vadd.f32 0.0, %v583
        %v585 = vpop.f32.mrb[0].mxu0
        %586 = vmatprep.mubr.f32.mxu0 0.0
        %587 = vmatmul.mubr.f32.gmra.mrb[0].mxu0 %v470
        %v588 = vpop.f32.mrb[0].mxu0
        %v589 = vadd.f32 0.0, %v588
        %v590 = vpop.f32.mrb[0].mxu0
        %591 = vmatprep.mubr.f32.mxu0 0.0
        %592 = vmatmul.mubr.f32.gmra.mrb[0].mxu0 %v471
        %v593 = vpop.f32.mrb[0].mxu0
        %v594 = vadd.f32 0.0, %v593
        %v595 = vpop.f32.mrb[0].mxu0
        %596 = vmatprep.mubr.f32.mxu0 0.0
        %597 = vmatmul.mubr.f32.gmra.mrb[0].mxu0 %v472
        %v598 = vpop.f32.mrb[0].mxu0
        %v599 = vadd.f32 0.0, %v598
        %v600 = vpop.f32.mrb[0].mxu0
        %601 = vmatprep.mubr.f32.mxu0 0.0
        %602 = vmatmul.mubr.f32.gmra.mrb[0].mxu0 %v473
        %v603 = vpop.f32.mrb[0].mxu0
        %v604 = vadd.f32 0.0, %v603
        %v605 = vpop.f32.mrb[0].mxu0
        %606 = vmatprep.mubr.f32.mxu0 0.0
        %607 = vmatmul.mubr.f32.gmra.mrb[0].mxu0 %v474
        %v608 = vpop.f32.mrb[0].mxu0
        %v609 = vadd.f32 0.0, %v608
        %v610 = vpop.f32.mrb[0].mxu0
        %611 = vmatprep.mubr.f32.mxu0 0.0
        %612 = vmatmul.mubr.f32.gmra.mrb[0].mxu0 %v475
        %v613 = vpop.f32.mrb[0].mxu0
        %v614 = vadd.f32 0.0, %v613
        %v615 = vpop.f32.mrb[0].mxu0
        %616 = vmatprep.mubr.f32.mxu0 0.0
        %617 = vmatmul.mubr.f32.gmra.mrb[0].mxu0 %v476
        %v618 = vpop.f32.mrb[0].mxu0
        %v619 = vadd.f32 0.0, %v618
        %v620 = vpop.f32.mrb[0].mxu0
        %621 = vdwg.mxu0
        %vm622 = vcmask 64512
        %v623 = vsel %vm622, %v544, -inf
        %624 = vmax.xlane.f32.xlu0 %v623
        %v625 = vpop.xlane.xlu0 %624
        %v626 = vsel %vm622, %v549, -inf
        %627 = vmax.xlane.f32.xlu0 %v626
        %v628 = vpop.xlane.xlu0 %627
        %v629 = vsel %vm622, %v554, -inf
        %630 = vmax.xlane.f32.xlu0 %v629
        %v631 = vpop.xlane.xlu0 %630
        %v632 = vsel %vm622, %v559, -inf
        %633 = vmax.xlane.f32.xlu0 %v632
        %v634 = vpop.xlane.xlu0 %633
        %v635 = vsel %vm622, %v564, -inf
        %636 = vmax.xlane.f32.xlu0 %v635
        %v637 = vpop.xlane.xlu0 %636
        %v638 = vsel %vm622, %v569, -inf
        %639 = vmax.xlane.f32.xlu0 %v638
        %v640 = vpop.xlane.xlu0 %639
        %v641 = vsel %vm622, %v574, -inf
        %642 = vmax.xlane.f32.xlu0 %v641
        %v643 = vpop.xlane.xlu0 %642
        %v644 = vsel %vm622, %v579, -inf
        %645 = vmax.xlane.f32.xlu0 %v644
        %v646 = vpop.xlane.xlu0 %645
        %v647 = vsel %vm622, %v584, -inf
        %648 = vmax.xlane.f32.xlu0 %v647
        %v649 = vpop.xlane.xlu0 %648
        %v650 = vsel %vm622, %v589, -inf
        %651 = vmax.xlane.f32.xlu0 %v650
        %v652 = vpop.xlane.xlu0 %651
        %v653 = vsel %vm622, %v594, -inf
        %654 = vmax.xlane.f32.xlu0 %v653
        %v655 = vpop.xlane.xlu0 %654
        %v656 = vsel %vm622, %v599, -inf
        %657 = vmax.xlane.f32.xlu0 %v656
        %v658 = vpop.xlane.xlu0 %657
        %v659 = vsel %vm622, %v604, -inf
        %660 = vmax.xlane.f32.xlu0 %v659
        %v661 = vpop.xlane.xlu0 %660
        %v662 = vsel %vm622, %v609, -inf
        %663 = vmax.xlane.f32.xlu0 %v662
        %v664 = vpop.xlane.xlu0 %663
        %v665 = vsel %vm622, %v614, -inf
        %666 = vmax.xlane.f32.xlu0 %v665
        %v667 = vpop.xlane.xlu0 %666
        %v668 = vsel %vm622, %v619, -inf
        %669 = vmax.xlane.f32.xlu0 %v668
        %v670 = vpop.xlane.xlu0 %669
        %v671 = vsub.f32 %v544, %v625
        %v672 = vsub.f32 %v549, %v628
        %v673 = vsub.f32 %v554, %v631
        %v674 = vsub.f32 %v559, %v634
        %v675 = vsub.f32 %v564, %v637
        %v676 = vsub.f32 %v569, %v640
        %v677 = vsub.f32 %v574, %v643
        %v678 = vsub.f32 %v579, %v646
        %v679 = vsub.f32 %v584, %v649
        %v680 = vsub.f32 %v589, %v652
        %v681 = vsub.f32 %v594, %v655
        %v682 = vsub.f32 %v599, %v658
        %v683 = vsub.f32 %v604, %v661
        %v684 = vsub.f32 %v609, %v664
        %v685 = vsub.f32 %v614, %v667
        %v686 = vsub.f32 %v619, %v670
        %v687 = vmul.f32 %v671, 1.442695
        %v688 = vpow.pop %v687
        %v689 = vmul.f32 %v672, 1.442695
        %v690 = vpow.pop %v689
        %v691 = vmul.f32 %v673, 1.442695
        %v692 = vpow.pop %v691
        %v693 = vmul.f32 %v674, 1.442695
        %v694 = vpow.pop %v693
        %v695 = vmul.f32 %v675, 1.442695
        %v696 = vpow.pop %v695
        %v697 = vmul.f32 %v676, 1.442695
        %v698 = vpow.pop %v697
        %v699 = vmul.f32 %v677, 1.442695
        %v700 = vpow.pop %v699
        %v701 = vmul.f32 %v678, 1.442695
        %v702 = vpow.pop %v701
        %v703 = vmul.f32 %v679, 1.442695
        %v704 = vpow.pop %v703
        %v705 = vmul.f32 %v680, 1.442695
        %v706 = vpow.pop %v705
        %v707 = vmul.f32 %v681, 1.442695
        %v708 = vpow.pop %v707
        %v709 = vmul.f32 %v682, 1.442695
        %v710 = vpow.pop %v709
        %v711 = vmul.f32 %v683, 1.442695
        %v712 = vpow.pop %v711
        %v713 = vmul.f32 %v684, 1.442695
        %v714 = vpow.pop %v713
        %v715 = vmul.f32 %v685, 1.442695
        %v716 = vpow.pop %v715
        %v717 = vmul.f32 %v686, 1.442695
        %v718 = vpow.pop %v717
        %v719 = vsel %vm622, %v688, 0.0
        %720 = vadd.xlane.f32.xlu0 %v719
        %v721 = vpop.xlane.xlu0 %720
        %v722 = vsel %vm622, %v690, 0.0
        %723 = vadd.xlane.f32.xlu0 %v722
        %v724 = vpop.xlane.xlu0 %723
        %v725 = vsel %vm622, %v692, 0.0
        %726 = vadd.xlane.f32.xlu0 %v725
        %v727 = vpop.xlane.xlu0 %726
        %v728 = vsel %vm622, %v694, 0.0
        %729 = vadd.xlane.f32.xlu0 %v728
        %v730 = vpop.xlane.xlu0 %729
        %v731 = vsel %vm622, %v696, 0.0
        %732 = vadd.xlane.f32.xlu0 %v731
        %v733 = vpop.xlane.xlu0 %732
        %v734 = vsel %vm622, %v698, 0.0
        %735 = vadd.xlane.f32.xlu0 %v734
        %v736 = vpop.xlane.xlu0 %735
        %v737 = vsel %vm622, %v700, 0.0
        %738 = vadd.xlane.f32.xlu0 %v737
        %v739 = vpop.xlane.xlu0 %738
        %v740 = vsel %vm622, %v702, 0.0
        %741 = vadd.xlane.f32.xlu0 %v740
        %v742 = vpop.xlane.xlu0 %741
        %v743 = vsel %vm622, %v704, 0.0
        %744 = vadd.xlane.f32.xlu0 %v743
        %v745 = vpop.xlane.xlu0 %744
        %v746 = vsel %vm622, %v706, 0.0
        %747 = vadd.xlane.f32.xlu0 %v746
        %v748 = vpop.xlane.xlu0 %747
        %v749 = vsel %vm622, %v708, 0.0
        %750 = vadd.xlane.f32.xlu0 %v749
        %v751 = vpop.xlane.xlu0 %750
        %v752 = vsel %vm622, %v710, 0.0
        %753 = vadd.xlane.f32.xlu0 %v752
        %v754 = vpop.xlane.xlu0 %753
        %v755 = vsel %vm622, %v712, 0.0
        %756 = vadd.xlane.f32.xlu0 %v755
        %v757 = vpop.xlane.xlu0 %756
        %v758 = vsel %vm622, %v714, 0.0
        %759 = vadd.xlane.f32.xlu0 %v758
        %v760 = vpop.xlane.xlu0 %759
        %v761 = vsel %vm622, %v716, 0.0
        %762 = vadd.xlane.f32.xlu0 %v761
        %v763 = vpop.xlane.xlu0 %762
        %v764 = vsel %vm622, %v718, 0.0
        %765 = vadd.xlane.f32.xlu0 %v764
        %v766 = vpop.xlane.xlu0 %765
        %v767 = vrcp.pop %v721
        %v768 = vrcp.pop %v724
        %v769 = vrcp.pop %v727
        %v770 = vrcp.pop %v730
        %v771 = vrcp.pop %v733
        %v772 = vrcp.pop %v736
        %v773 = vrcp.pop %v739
        %v774 = vrcp.pop %v742
        %v775 = vrcp.pop %v745
        %v776 = vrcp.pop %v748
        %v777 = vrcp.pop %v751
        %v778 = vrcp.pop %v754
        %v779 = vrcp.pop %v757
        %v780 = vrcp.pop %v760
        %v781 = vrcp.pop %v763
        %v782 = vrcp.pop %v766
        %v783 = vmul.f32 %v688, %v767
        %v784 = vmul.f32 %v690, %v768
        %v785 = vmul.f32 %v692, %v769
        %v786 = vmul.f32 %v694, %v770
        %v787 = vmul.f32 %v696, %v771
        %v788 = vmul.f32 %v698, %v772
        %v789 = vmul.f32 %v700, %v773
        %v790 = vmul.f32 %v702, %v774
        %v791 = vmul.f32 %v704, %v775
        %v792 = vmul.f32 %v706, %v776
        %v793 = vmul.f32 %v708, %v777
        %v794 = vmul.f32 %v710, %v778
        %v795 = vmul.f32 %v712, %v779
        %v796 = vmul.f32 %v714, %v780
        %v797 = vmul.f32 %v716, %v781
        %v798 = vmul.f32 %v718, %v782
        %v800 = vsel %vm622, %v783, 0
        %v803 = vsel %vm622, %v784, 0
        %v806 = vsel %vm622, %v785, 0
        %v809 = vsel %vm622, %v786, 0
        %v812 = vsel %vm622, %v787, 0
        %v815 = vsel %vm622, %v788, 0
        %v818 = vsel %vm622, %v789, 0
        %v821 = vsel %vm622, %v790, 0
        %v824 = vsel %vm622, %v791, 0
        %v827 = vsel %vm622, %v792, 0
        %v830 = vsel %vm622, %v793, 0
        %v833 = vsel %vm622, %v794, 0
        %v836 = vsel %vm622, %v795, 0
        %v839 = vsel %vm622, %v796, 0
        %v842 = vsel %vm622, %v797, 0
        %v845 = vsel %vm622, %v798, 0
        %847 = vmatprep.subr.mxu0 0.0
        %848 = vmatpush1.msra.mxu0 %v458
        %849 = vmatprep.subr.mxu0 0.0
        %850 = vmatpush1.msra.mxu0 0.0
        %851 = vmatprep.subr.mxu0 0.0
        %852 = vmatpush1.msra.mxu0 0.0
        %853 = vmatprep.subr.mxu0 0.0
        %854 = vmatpush1.msra.mxu0 0.0
        %855 = vmatprep.subr.mxu0 0.0
        %856 = vmatpush1.msra.mxu0 0.0
        %857 = vmatprep.subr.mxu0 0.0
        %858 = vmatpush1.msra.mxu0 0.0
        %859 = vmatprep.subr.mxu0 0.0
        %860 = vmatpush1.msra.mxu0 0.0
        %861 = vmatprep.subr.mxu0 0.0
        %862 = vmatpush1.msra.mxu0 0.0
        %863 = vmatprep.subr.mxu0 0.0
        %864 = vmatpush1.msra.mxu0 0.0
        %865 = vmatprep.subr.mxu0 0.0
        %866 = vmatpush1.msra.mxu0 0.0
        %867 = vmatprep.subr.mxu0 0.0
        %868 = vmatpush1.msra.mxu0 0.0
        %869 = vmatprep.subr.mxu0 0.0
        %870 = vmatpush1.msra.mxu0 0.0
        %871 = vmatprep.subr.mxu0 0.0
        %872 = vmatpush1.msra.mxu0 0.0
        %873 = vmatprep.subr.mxu0 0.0
        %874 = vmatpush1.msra.mxu0 0.0
        %875 = vmatprep.subr.mxu0 0.0
        %876 = vmatpush1.msra.mxu0 0.0
        %877 = vmatprep.subr.mxu0 0.0
        %878 = vmatpush1.msra.mxu0 0.0
        %879 = vmatprep.subr.mxu0 0.0
        %880 = vmatpush1.msra.mxu0 0.0
        %881 = vmatprep.subr.mxu0 0.0
        %882 = vmatpush1.msra.mxu0 0.0
        %883 = vmatprep.subr.mxu0 0.0
        %884 = vmatpush1.msra.mxu0 0.0
        %885 = vmatprep.subr.mxu0 0.0
        %886 = vmatpush1.msra.mxu0 0.0
        %887 = vmatprep.subr.mxu0 0.0
        %888 = vmatpush1.msra.mxu0 0.0
        %889 = vmatprep.subr.mxu0 0.0
        %890 = vmatpush1.msra.mxu0 0.0
        %891 = vmatprep.subr.mxu0 0.0
        %892 = vmatpush1.msra.mxu0 0.0
        %893 = vmatprep.subr.mxu0 0.0
        %894 = vmatpush1.msra.mxu0 0.0
        %895 = vmatprep.subr.mxu0 0.0
        %896 = vmatpush1.msra.mxu0 0.0
        %897 = vmatprep.subr.mxu0 0.0
        %898 = vmatpush1.msra.mxu0 0.0
        %899 = vmatprep.subr.mxu0 0.0
        %900 = vmatpush1.msra.mxu0 0.0
        %901 = vmatprep.subr.mxu0 0.0
        %902 = vmatpush1.msra.mxu0 0.0
        %903 = vmatprep.subr.mxu0 0.0
        %904 = vmatpush1.msra.mxu0 0.0
        %905 = vmatprep.subr.mxu0 0.0
        %906 = vmatpush1.msra.mxu0 0.0
        %907 = vmatprep.subr.mxu0 0.0
        %908 = vmatpush1.msra.mxu0 0.0
        %909 = vmatprep.subr.mxu0 0.0
        %910 = vmatpush1.msra.mxu0 0.0
        %911 = vmatprep.mubr.f32.mxu0 0.0
        %912 = vmatmul.mubr.f32.gmra.mrb[0].mxu0 %v800
        %v913 = vpop.f32.mrb[0].mxu0
        %v914 = vadd.f32 0.0, %v913
        %v915 = vpop.f32.mrb[0].mxu0
        %916 = vmatprep.mubr.f32.mxu0 0.0
        %917 = vmatmul.mubr.f32.gmra.mrb[0].mxu0 %v803
        %v918 = vpop.f32.mrb[0].mxu0
        %v919 = vadd.f32 0.0, %v918
        %v920 = vpop.f32.mrb[0].mxu0
        %921 = vmatprep.mubr.f32.mxu0 0.0
        %922 = vmatmul.mubr.f32.gmra.mrb[0].mxu0 %v806
        %v923 = vpop.f32.mrb[0].mxu0
        %v924 = vadd.f32 0.0, %v923
        %v925 = vpop.f32.mrb[0].mxu0
        %926 = vmatprep.mubr.f32.mxu0 0.0
        %927 = vmatmul.mubr.f32.gmra.mrb[0].mxu0 %v809
        %v928 = vpop.f32.mrb[0].mxu0
        %v929 = vadd.f32 0.0, %v928
        %v930 = vpop.f32.mrb[0].mxu0
        %931 = vmatprep.mubr.f32.mxu0 0.0
        %932 = vmatmul.mubr.f32.gmra.mrb[0].mxu0 %v812
        %v933 = vpop.f32.mrb[0].mxu0
        %v934 = vadd.f32 0.0, %v933
        %v935 = vpop.f32.mrb[0].mxu0
        %936 = vmatprep.mubr.f32.mxu0 0.0
        %937 = vmatmul.mubr.f32.gmra.mrb[0].mxu0 %v815
        %v938 = vpop.f32.mrb[0].mxu0
        %v939 = vadd.f32 0.0, %v938
        %v940 = vpop.f32.mrb[0].mxu0
        %941 = vmatprep.mubr.f32.mxu0 0.0
        %942 = vmatmul.mubr.f32.gmra.mrb[0].mxu0 %v818
        %v943 = vpop.f32.mrb[0].mxu0
        %v944 = vadd.f32 0.0, %v943
        %v945 = vpop.f32.mrb[0].mxu0
        %946 = vmatprep.mubr.f32.mxu0 0.0
        %947 = vmatmul.mubr.f32.gmra.mrb[0].mxu0 %v821
        %v948 = vpop.f32.mrb[0].mxu0
        %v949 = vadd.f32 0.0, %v948
        %v950 = vpop.f32.mrb[0].mxu0
        %951 = vmatprep.mubr.f32.mxu0 0.0
        %952 = vmatmul.mubr.f32.gmra.mrb[0].mxu0 %v824
        %v953 = vpop.f32.mrb[0].mxu0
        %v954 = vadd.f32 0.0, %v953
        %v955 = vpop.f32.mrb[0].mxu0
        %956 = vmatprep.mubr.f32.mxu0 0.0
        %957 = vmatmul.mubr.f32.gmra.mrb[0].mxu0 %v827
        %v958 = vpop.f32.mrb[0].mxu0
        %v959 = vadd.f32 0.0, %v958
        %v960 = vpop.f32.mrb[0].mxu0
        %961 = vmatprep.mubr.f32.mxu0 0.0
        %962 = vmatmul.mubr.f32.gmra.mrb[0].mxu0 %v830
        %v963 = vpop.f32.mrb[0].mxu0
        %v964 = vadd.f32 0.0, %v963
        %v965 = vpop.f32.mrb[0].mxu0
        %966 = vmatprep.mubr.f32.mxu0 0.0
        %967 = vmatmul.mubr.f32.gmra.mrb[0].mxu0 %v833
        %v968 = vpop.f32.mrb[0].mxu0
        %v969 = vadd.f32 0.0, %v968
        %v970 = vpop.f32.mrb[0].mxu0
        %971 = vmatprep.mubr.f32.mxu0 0.0
        %972 = vmatmul.mubr.f32.gmra.mrb[0].mxu0 %v836
        %v973 = vpop.f32.mrb[0].mxu0
        %v974 = vadd.f32 0.0, %v973
        %v975 = vpop.f32.mrb[0].mxu0
        %976 = vmatprep.mubr.f32.mxu0 0.0
        %977 = vmatmul.mubr.f32.gmra.mrb[0].mxu0 %v839
        %v978 = vpop.f32.mrb[0].mxu0
        %v979 = vadd.f32 0.0, %v978
        %v980 = vpop.f32.mrb[0].mxu0
        %981 = vmatprep.mubr.f32.mxu0 0.0
        %982 = vmatmul.mubr.f32.gmra.mrb[0].mxu0 %v842
        %v983 = vpop.f32.mrb[0].mxu0
        %v984 = vadd.f32 0.0, %v983
        %v985 = vpop.f32.mrb[0].mxu0
        %986 = vmatprep.mubr.f32.mxu0 0.0
        %987 = vmatmul.mubr.f32.gmra.mrb[0].mxu0 %v845
        %v988 = vpop.f32.mrb[0].mxu0
        %v989 = vadd.f32 0.0, %v988
        %v990 = vpop.f32.mrb[0].mxu0
        %991 = vdwg.mxu0
        %v992 = vmul.f32 %v914, %v250
        %v993 = vmul.f32 %v919, %v251
        %v994 = vmul.f32 %v924, %v252
        %v995 = vmul.f32 %v929, %v253
        %v996 = vmul.f32 %v934, %v254
        %v997 = vmul.f32 %v939, %v255
        %v998 = vmul.f32 %v944, %v256
        %v999 = vmul.f32 %v949, %v257
        %v1000 = vmul.f32 %v954, %v258
        %v1001 = vmul.f32 %v959, %v259
        %v1002 = vmul.f32 %v964, %v260
        %v1003 = vmul.f32 %v969, %v261
        %v1004 = vmul.f32 %v974, %v262
        %v1005 = vmul.f32 %v979, %v263
        %v1006 = vmul.f32 %v984, %v264
        %v1007 = vmul.f32 %v989, %v265
        %v1008 = vadd.f32 %v992, %v1000
        %v1009 = vadd.f32 %v993, %v1001
        %v1010 = vadd.f32 %v994, %v1002
        %v1011 = vadd.f32 %v995, %v1003
        %v1012 = vadd.f32 %v996, %v1004
        %v1013 = vadd.f32 %v997, %v1005
        %v1014 = vadd.f32 %v998, %v1006
        %v1015 = vadd.f32 %v999, %v1007
        %v1016 = vadd.f32 %v1008, %v1012
        %v1017 = vadd.f32 %v1009, %v1013
        %v1018 = vadd.f32 %v1010, %v1014
        %v1019 = vadd.f32 %v1011, %v1015
        %v1020 = vadd.f32 %v1016, %v1018
        %v1021 = vadd.f32 %v1017, %v1019
        %v1022 = vadd.f32 %v1020, %v1021
        %v1023 = vld [vmem:[#allocation2] sm:$0xff]
        %v1024 = vld [vmem:[#allocation2 + $0x8] sm:$0xff]
        %1025 = vxpose.xlu0.b32.start [1/16] %v1022, 128
        %1026 = vxpose.xlu0.b32.cont [2/16] 0.0, 128
        %1027 = vxpose.xlu0.b32.cont [3/16] 0.0, 128
        %1028 = vxpose.xlu0.b32.cont [4/16] 0.0, 128
        %1029 = vxpose.xlu0.b32.cont [5/16] 0.0, 128
        %1030 = vxpose.xlu0.b32.cont [6/16] 0.0, 128
        %1031 = vxpose.xlu0.b32.cont [7/16] 0.0, 128
        %1032 = vxpose.xlu0.b32.cont [8/16] 0.0, 128
        %1033 = vxpose.xlu0.b32.cont [9/16] 0.0, 128
        %1034 = vxpose.xlu0.b32.cont [10/16] 0.0, 128
        %1035 = vxpose.xlu0.b32.cont [11/16] 0.0, 128
        %1036 = vxpose.xlu0.b32.cont [12/16] 0.0, 128
        %1037 = vxpose.xlu0.b32.cont [13/16] 0.0, 128
        %1038 = vxpose.xlu0.b32.cont [14/16] 0.0, 128
        %1039 = vxpose.xlu0.b32.cont [15/16] 0.0, 128
        %1040 = vxpose.xlu0.b32.end [16/16] 0.0, 128
        %v1041 = vpop.trf.xlu0
        %v1042 = vpop.trf.xlu0
        %v1043 = vpop.trf.xlu0
        %v1044 = vpop.trf.xlu0
        %v1045 = vpop.trf.xlu0
        %v1046 = vpop.trf.xlu0
        %v1047 = vpop.trf.xlu0
        %v1048 = vpop.trf.xlu0
        %v1049 = vpop.trf.xlu0
        %v1050 = vpop.trf.xlu0
        %v1051 = vpop.trf.xlu0
        %v1052 = vpop.trf.xlu0
        %v1053 = vpop.trf.xlu0
        %v1054 = vpop.trf.xlu0
        %v1055 = vpop.trf.xlu0
        %v1056 = vpop.trf.xlu0
        %v1058 = vsel %vm622, %v1041, 0
        %v1061 = vsel %vm622, %v1042, 0
        %v1064 = vsel %vm622, %v1043, 0
        %v1067 = vsel %vm622, %v1044, 0
        %v1070 = vsel %vm622, %v1045, 0
        %v1073 = vsel %vm622, %v1046, 0
        %v1076 = vsel %vm622, %v1047, 0
        %v1079 = vsel %vm622, %v1048, 0
        %v1082 = vsel %vm622, %v1049, 0
        %v1085 = vsel %vm622, %v1050, 0
        %v1088 = vsel %vm622, %v1051, 0
        %v1091 = vsel %vm622, %v1052, 0
        %v1094 = vsel %vm622, %v1053, 0
        %v1097 = vsel %vm622, %v1054, 0
        %v1100 = vsel %vm622, %v1055, 0
        %v1103 = vsel %vm622, %v1056, 0
        %1105 = vmatprep.subr.mxu0 %v1024
        %1106 = vmatpush1.msra.mxu0 %v1023
        %1107 = vmatprep.subr.mxu0 0.0
        %1108 = vmatpush1.msra.mxu0 0.0
        %1109 = vmatprep.subr.mxu0 0.0
        %1110 = vmatpush1.msra.mxu0 0.0
        %1111 = vmatprep.subr.mxu0 0.0
        %1112 = vmatpush1.msra.mxu0 0.0
        %1113 = vmatprep.subr.mxu0 0.0
        %1114 = vmatpush1.msra.mxu0 0.0
        %1115 = vmatprep.subr.mxu0 0.0
        %1116 = vmatpush1.msra.mxu0 0.0
        %1117 = vmatprep.subr.mxu0 0.0
        %1118 = vmatpush1.msra.mxu0 0.0
        %1119 = vmatprep.subr.mxu0 0.0
        %1120 = vmatpush1.msra.mxu0 0.0
        %1121 = vmatprep.subr.mxu0 0.0
        %1122 = vmatpush1.msra.mxu0 0.0
        %1123 = vmatprep.subr.mxu0 0.0
        %1124 = vmatpush1.msra.mxu0 0.0
        %1125 = vmatprep.subr.mxu0 0.0
        %1126 = vmatpush1.msra.mxu0 0.0
        %1127 = vmatprep.subr.mxu0 0.0
        %1128 = vmatpush1.msra.mxu0 0.0
        %1129 = vmatprep.subr.mxu0 0.0
        %1130 = vmatpush1.msra.mxu0 0.0
        %1131 = vmatprep.subr.mxu0 0.0
        %1132 = vmatpush1.msra.mxu0 0.0
        %1133 = vmatprep.subr.mxu0 0.0
        %1134 = vmatpush1.msra.mxu0 0.0
        %1135 = vmatprep.subr.mxu0 0.0
        %1136 = vmatpush1.msra.mxu0 0.0
        %1137 = vmatprep.subr.mxu0 0.0
        %1138 = vmatpush1.msra.mxu0 0.0
        %1139 = vmatprep.subr.mxu0 0.0
        %1140 = vmatpush1.msra.mxu0 0.0
        %1141 = vmatprep.subr.mxu0 0.0
        %1142 = vmatpush1.msra.mxu0 0.0
        %1143 = vmatprep.subr.mxu0 0.0
        %1144 = vmatpush1.msra.mxu0 0.0
        %1145 = vmatprep.subr.mxu0 0.0
        %1146 = vmatpush1.msra.mxu0 0.0
        %1147 = vmatprep.subr.mxu0 0.0
        %1148 = vmatpush1.msra.mxu0 0.0
        %1149 = vmatprep.subr.mxu0 0.0
        %1150 = vmatpush1.msra.mxu0 0.0
        %1151 = vmatprep.subr.mxu0 0.0
        %1152 = vmatpush1.msra.mxu0 0.0
        %1153 = vmatprep.subr.mxu0 0.0
        %1154 = vmatpush1.msra.mxu0 0.0
        %1155 = vmatprep.subr.mxu0 0.0
        %1156 = vmatpush1.msra.mxu0 0.0
        %1157 = vmatprep.subr.mxu0 0.0
        %1158 = vmatpush1.msra.mxu0 0.0
        %1159 = vmatprep.subr.mxu0 0.0
        %1160 = vmatpush1.msra.mxu0 0.0
        %1161 = vmatprep.subr.mxu0 0.0
        %1162 = vmatpush1.msra.mxu0 0.0
        %1163 = vmatprep.subr.mxu0 0.0
        %1164 = vmatpush1.msra.mxu0 0.0
        %1165 = vmatprep.subr.mxu0 0.0
        %1166 = vmatpush1.msra.mxu0 0.0
        %1167 = vmatprep.subr.mxu0 0.0
        %1168 = vmatpush1.msra.mxu0 0.0
        %1169 = vmatprep.mubr.f32.mxu0 0.0
        %1170 = vmatmul.mubr.f32.gmra.mrb[0].mxu0 %v1058
        %v1171 = vpop.f32.mrb[0].mxu0
        %v1172 = vadd.f32 0.0, %v1171
        %v1173 = vpop.f32.mrb[0].mxu0
        %1174 = vmatprep.mubr.f32.mxu0 0.0
        %1175 = vmatmul.mubr.f32.gmra.mrb[0].mxu0 %v1061
        %v1176 = vpop.f32.mrb[0].mxu0
        %v1177 = vadd.f32 0.0, %v1176
        %v1178 = vpop.f32.mrb[0].mxu0
        %1179 = vmatprep.mubr.f32.mxu0 0.0
        %1180 = vmatmul.mubr.f32.gmra.mrb[0].mxu0 %v1064
        %v1181 = vpop.f32.mrb[0].mxu0
        %v1182 = vadd.f32 0.0, %v1181
        %v1183 = vpop.f32.mrb[0].mxu0
        %1184 = vmatprep.mubr.f32.mxu0 0.0
        %1185 = vmatmul.mubr.f32.gmra.mrb[0].mxu0 %v1067
        %v1186 = vpop.f32.mrb[0].mxu0
        %v1187 = vadd.f32 0.0, %v1186
        %v1188 = vpop.f32.mrb[0].mxu0
        %1189 = vmatprep.mubr.f32.mxu0 0.0
        %1190 = vmatmul.mubr.f32.gmra.mrb[0].mxu0 %v1070
        %v1191 = vpop.f32.mrb[0].mxu0
        %v1192 = vpop.f32.mrb[0].mxu0
        %v1193 = vadd.f32 0.0, %v1192
        %1194 = vmatprep.mubr.f32.mxu0 0.0
        %1195 = vmatmul.mubr.f32.gmra.mrb[0].mxu0 %v1073
        %v1196 = vpop.f32.mrb[0].mxu0
        %v1197 = vpop.f32.mrb[0].mxu0
        %v1198 = vadd.f32 0.0, %v1197
        %1199 = vmatprep.mubr.f32.mxu0 0.0
        %1200 = vmatmul.mubr.f32.gmra.mrb[0].mxu0 %v1076
        %v1201 = vpop.f32.mrb[0].mxu0
        %v1202 = vpop.f32.mrb[0].mxu0
        %v1203 = vadd.f32 0.0, %v1202
        %1204 = vmatprep.mubr.f32.mxu0 0.0
        %1205 = vmatmul.mubr.f32.gmra.mrb[0].mxu0 %v1079
        %v1206 = vpop.f32.mrb[0].mxu0
        %v1207 = vpop.f32.mrb[0].mxu0
        %v1208 = vadd.f32 0.0, %v1207
        %1209 = vmatprep.mubr.f32.mxu0 0.0
        %1210 = vmatmul.mubr.f32.gmra.mrb[0].mxu0 %v1082
        %v1211 = vpop.f32.mrb[0].mxu0
        %v1212 = vadd.f32 0.0, %v1211
        %v1213 = vpop.f32.mrb[0].mxu0
        %1214 = vmatprep.mubr.f32.mxu0 0.0
        %1215 = vmatmul.mubr.f32.gmra.mrb[0].mxu0 %v1085
        %v1216 = vpop.f32.mrb[0].mxu0
        %v1217 = vadd.f32 0.0, %v1216
        %v1218 = vpop.f32.mrb[0].mxu0
        %1219 = vmatprep.mubr.f32.mxu0 0.0
        %1220 = vmatmul.mubr.f32.gmra.mrb[0].mxu0 %v1088
        %v1221 = vpop.f32.mrb[0].mxu0
        %v1222 = vadd.f32 0.0, %v1221
        %v1223 = vpop.f32.mrb[0].mxu0
        %1224 = vmatprep.mubr.f32.mxu0 0.0
        %1225 = vmatmul.mubr.f32.gmra.mrb[0].mxu0 %v1091
        %v1226 = vpop.f32.mrb[0].mxu0
        %v1227 = vadd.f32 0.0, %v1226
        %v1228 = vpop.f32.mrb[0].mxu0
        %1229 = vmatprep.mubr.f32.mxu0 0.0
        %1230 = vmatmul.mubr.f32.gmra.mrb[0].mxu0 %v1094
        %v1231 = vpop.f32.mrb[0].mxu0
        %v1232 = vpop.f32.mrb[0].mxu0
        %v1233 = vadd.f32 0.0, %v1232
        %1234 = vmatprep.mubr.f32.mxu0 0.0
        %1235 = vmatmul.mubr.f32.gmra.mrb[0].mxu0 %v1097
        %v1236 = vpop.f32.mrb[0].mxu0
        %v1237 = vpop.f32.mrb[0].mxu0
        %v1238 = vadd.f32 0.0, %v1237
        %1239 = vmatprep.mubr.f32.mxu0 0.0
        %1240 = vmatmul.mubr.f32.gmra.mrb[0].mxu0 %v1100
        %v1241 = vpop.f32.mrb[0].mxu0
        %v1242 = vpop.f32.mrb[0].mxu0
        %v1243 = vadd.f32 0.0, %v1242
        %1244 = vmatprep.mubr.f32.mxu0 0.0
        %1245 = vmatmul.mubr.f32.gmra.mrb[0].mxu0 %v1103
        %v1246 = vpop.f32.mrb[0].mxu0
        %v1247 = vpop.f32.mrb[0].mxu0
        %v1248 = vadd.f32 0.0, %v1247
        %1249 = vdwg.mxu0
        %v1250 = vld [vmem:[%s4 + $0x8] sm:$0xff]
        %v1251 = vld [vmem:[%s4 + $0x10] sm:$0xff]
        %v1252 = vld [vmem:[%s4 + $0x18] sm:$0xff]
        %v1253 = vld [vmem:[%s4 + $0x20] sm:$0xff]
        %1255 = vset.pattern.permute.xlu0 0
        %1256 = vperm.xlu0 %1255, %v1250
        %v1257 = vpop.permute.xlu0 %1256
        %1260 = vset.pattern.permute.xlu0 0
        %1261 = vperm.xlu0 %1260, %v1251
        %v1262 = vpop.permute.xlu0 %1261
        %1265 = vset.pattern.permute.xlu0 0
        %1266 = vperm.xlu0 %1265, %v1252
        %v1267 = vpop.permute.xlu0 %1266
        %1270 = vset.pattern.permute.xlu0 0
        %1271 = vperm.xlu0 %1270, %v1253
        %v1272 = vpop.permute.xlu0 %1271
        %v1274 = vmul.f32 %v1172, %v1257
        %v1275 = vmul.f32 %v1177, %v1262
        %v1276 = vmul.f32 %v1182, %v1267
        %v1277 = vmul.f32 %v1187, %v1272
        %1278 = vset.pattern.permute.xlu0 1
        %1279 = vperm.xlu0 %1278, %v1250
        %v1280 = vpop.permute.xlu0 %1279
        %1282 = vset.pattern.permute.xlu0 1
        %1283 = vperm.xlu0 %1282, %v1251
        %v1284 = vpop.permute.xlu0 %1283
        %1286 = vset.pattern.permute.xlu0 1
        %1287 = vperm.xlu0 %1286, %v1252
        %v1288 = vpop.permute.xlu0 %1287
        %1290 = vset.pattern.permute.xlu0 1
        %1291 = vperm.xlu0 %1290, %v1253
        %v1292 = vpop.permute.xlu0 %1291
        %v1294 = vmul.f32 %v1172, %v1280
        %v1295 = vmul.f32 %v1177, %v1284
        %v1296 = vmul.f32 %v1182, %v1288
        %v1297 = vmul.f32 %v1187, %v1292
        %1302 = vrot.lane.b32.xlu0 %v1294, 96
        %v1303 = vpop.permute.xlu0 %1302
        %1304 = vrot.lane.b32.xlu0 %v1295, 96
        %v1305 = vpop.permute.xlu0 %1304
        %1306 = vrot.lane.b32.xlu0 %v1296, 96
        %v1307 = vpop.permute.xlu0 %1306
        %1308 = vrot.lane.b32.xlu0 %v1297, 96
        %v1309 = vpop.permute.xlu0 %1308
        %v1314 = vadd.f32 %v1274, %v1303
        %v1315 = vadd.f32 %v1275, %v1305
        %v1316 = vadd.f32 %v1276, %v1307
        %v1317 = vadd.f32 %v1277, %v1309
        %1318 = vset.pattern.permute.xlu0 2
        %1319 = vperm.xlu0 %1318, %v1250
        %v1320 = vpop.permute.xlu0 %1319
        %1322 = vset.pattern.permute.xlu0 2
        %1323 = vperm.xlu0 %1322, %v1251
        %v1324 = vpop.permute.xlu0 %1323
        %1326 = vset.pattern.permute.xlu0 2
        %1327 = vperm.xlu0 %1326, %v1252
        %v1328 = vpop.permute.xlu0 %1327
        %1330 = vset.pattern.permute.xlu0 2
        %1331 = vperm.xlu0 %1330, %v1253
        %v1332 = vpop.permute.xlu0 %1331
        %v1334 = vmul.f32 %v1172, %v1320
        %v1335 = vmul.f32 %v1177, %v1324
        %v1336 = vmul.f32 %v1182, %v1328
        %v1337 = vmul.f32 %v1187, %v1332
        %1342 = vrot.lane.b32.xlu0 %v1334, 64
        %v1343 = vpop.permute.xlu0 %1342
        %1344 = vrot.lane.b32.xlu0 %v1335, 64
        %v1345 = vpop.permute.xlu0 %1344
        %1346 = vrot.lane.b32.xlu0 %v1336, 64
        %v1347 = vpop.permute.xlu0 %1346
        %1348 = vrot.lane.b32.xlu0 %v1337, 64
        %v1349 = vpop.permute.xlu0 %1348
        %v1354 = vadd.f32 %v1314, %v1343
        %v1355 = vadd.f32 %v1315, %v1345
        %v1356 = vadd.f32 %v1316, %v1347
        %v1357 = vadd.f32 %v1317, %v1349
        %1358 = vset.pattern.permute.xlu0 3
        %1359 = vperm.xlu0 %1358, %v1250
        %v1360 = vpop.permute.xlu0 %1359
        %1362 = vset.pattern.permute.xlu0 3
        %1363 = vperm.xlu0 %1362, %v1251
        %v1364 = vpop.permute.xlu0 %1363
        %1366 = vset.pattern.permute.xlu0 3
        %1367 = vperm.xlu0 %1366, %v1252
        %v1368 = vpop.permute.xlu0 %1367
        %1370 = vset.pattern.permute.xlu0 3
        %1371 = vperm.xlu0 %1370, %v1253
        %v1372 = vpop.permute.xlu0 %1371
        %v1374 = vmul.f32 %v1172, %v1360
        %v1375 = vmul.f32 %v1177, %v1364
        %v1376 = vmul.f32 %v1182, %v1368
        %v1377 = vmul.f32 %v1187, %v1372
        %1382 = vrot.lane.b32.xlu0 %v1374, 32
        %v1383 = vpop.permute.xlu0 %1382
        %1384 = vrot.lane.b32.xlu0 %v1375, 32
        %v1385 = vpop.permute.xlu0 %1384
        %1386 = vrot.lane.b32.xlu0 %v1376, 32
        %v1387 = vpop.permute.xlu0 %1386
        %1388 = vrot.lane.b32.xlu0 %v1377, 32
        %v1389 = vpop.permute.xlu0 %1388
        %v1394 = vadd.f32 %v1354, %v1383
        %v1395 = vadd.f32 %v1355, %v1385
        %v1396 = vadd.f32 %v1356, %v1387
        %v1397 = vadd.f32 %v1357, %v1389
        %v1398 = vmul.f32 %v1193, %v1257
        %v1399 = vmul.f32 %v1198, %v1262
        %v1400 = vmul.f32 %v1203, %v1267
        %v1401 = vmul.f32 %v1208, %v1272
        %v1402 = vmul.f32 %v1193, %v1280
        %v1403 = vmul.f32 %v1198, %v1284
        %v1404 = vmul.f32 %v1203, %v1288
        %v1405 = vmul.f32 %v1208, %v1292
        %1410 = vrot.lane.b32.xlu0 %v1402, 96
        %v1411 = vpop.permute.xlu0 %1410
        %1412 = vrot.lane.b32.xlu0 %v1403, 96
        %v1413 = vpop.permute.xlu0 %1412
        %1414 = vrot.lane.b32.xlu0 %v1404, 96
        %v1415 = vpop.permute.xlu0 %1414
        %1416 = vrot.lane.b32.xlu0 %v1405, 96
        %v1417 = vpop.permute.xlu0 %1416
        %v1422 = vadd.f32 %v1398, %v1411
        %v1423 = vadd.f32 %v1399, %v1413
        %v1424 = vadd.f32 %v1400, %v1415
        %v1425 = vadd.f32 %v1401, %v1417
        %v1426 = vmul.f32 %v1193, %v1320
        %v1427 = vmul.f32 %v1198, %v1324
        %v1428 = vmul.f32 %v1203, %v1328
        %v1429 = vmul.f32 %v1208, %v1332
        %1434 = vrot.lane.b32.xlu0 %v1426, 64
        %v1435 = vpop.permute.xlu0 %1434
        %1436 = vrot.lane.b32.xlu0 %v1427, 64
        %v1437 = vpop.permute.xlu0 %1436
        %1438 = vrot.lane.b32.xlu0 %v1428, 64
        %v1439 = vpop.permute.xlu0 %1438
        %1440 = vrot.lane.b32.xlu0 %v1429, 64
        %v1441 = vpop.permute.xlu0 %1440
        %v1446 = vadd.f32 %v1422, %v1435
        %v1447 = vadd.f32 %v1423, %v1437
        %v1448 = vadd.f32 %v1424, %v1439
        %v1449 = vadd.f32 %v1425, %v1441
        %v1450 = vmul.f32 %v1193, %v1360
        %v1451 = vmul.f32 %v1198, %v1364
        %v1452 = vmul.f32 %v1203, %v1368
        %v1453 = vmul.f32 %v1208, %v1372
        %1458 = vrot.lane.b32.xlu0 %v1450, 32
        %v1459 = vpop.permute.xlu0 %1458
        %1460 = vrot.lane.b32.xlu0 %v1451, 32
        %v1461 = vpop.permute.xlu0 %1460
        %1462 = vrot.lane.b32.xlu0 %v1452, 32
        %v1463 = vpop.permute.xlu0 %1462
        %1464 = vrot.lane.b32.xlu0 %v1453, 32
        %v1465 = vpop.permute.xlu0 %1464
        %v1470 = vadd.f32 %v1446, %v1459
        %v1471 = vadd.f32 %v1447, %v1461
        %v1472 = vadd.f32 %v1448, %v1463
        %v1473 = vadd.f32 %v1449, %v1465
        %v1474 = vmul.f32 %v1212, %v1257
        %v1475 = vmul.f32 %v1217, %v1262
        %v1476 = vmul.f32 %v1222, %v1267
        %v1477 = vmul.f32 %v1227, %v1272
        %v1478 = vmul.f32 %v1212, %v1280
        %v1479 = vmul.f32 %v1217, %v1284
        %v1480 = vmul.f32 %v1222, %v1288
        %v1481 = vmul.f32 %v1227, %v1292
        %1486 = vrot.lane.b32.xlu0 %v1478, 96
        %v1487 = vpop.permute.xlu0 %1486
        %1488 = vrot.lane.b32.xlu0 %v1479, 96
        %v1489 = vpop.permute.xlu0 %1488
        %1490 = vrot.lane.b32.xlu0 %v1480, 96
        %v1491 = vpop.permute.xlu0 %1490
        %1492 = vrot.lane.b32.xlu0 %v1481, 96
        %v1493 = vpop.permute.xlu0 %1492
        %v1498 = vadd.f32 %v1474, %v1487
        %v1499 = vadd.f32 %v1475, %v1489
        %v1500 = vadd.f32 %v1476, %v1491
        %v1501 = vadd.f32 %v1477, %v1493
        %v1502 = vmul.f32 %v1212, %v1320
        %v1503 = vmul.f32 %v1217, %v1324
        %v1504 = vmul.f32 %v1222, %v1328
        %v1505 = vmul.f32 %v1227, %v1332
        %1510 = vrot.lane.b32.xlu0 %v1502, 64
        %v1511 = vpop.permute.xlu0 %1510
        %1512 = vrot.lane.b32.xlu0 %v1503, 64
        %v1513 = vpop.permute.xlu0 %1512
        %1514 = vrot.lane.b32.xlu0 %v1504, 64
        %v1515 = vpop.permute.xlu0 %1514
        %1516 = vrot.lane.b32.xlu0 %v1505, 64
        %v1517 = vpop.permute.xlu0 %1516
        %v1522 = vadd.f32 %v1498, %v1511
        %v1523 = vadd.f32 %v1499, %v1513
        %v1524 = vadd.f32 %v1500, %v1515
        %v1525 = vadd.f32 %v1501, %v1517
        %v1526 = vmul.f32 %v1212, %v1360
        %v1527 = vmul.f32 %v1217, %v1364
        %v1528 = vmul.f32 %v1222, %v1368
        %v1529 = vmul.f32 %v1227, %v1372
        %1534 = vrot.lane.b32.xlu0 %v1526, 32
        %v1535 = vpop.permute.xlu0 %1534
        %1536 = vrot.lane.b32.xlu0 %v1527, 32
        %v1537 = vpop.permute.xlu0 %1536
        %1538 = vrot.lane.b32.xlu0 %v1528, 32
        %v1539 = vpop.permute.xlu0 %1538
        %1540 = vrot.lane.b32.xlu0 %v1529, 32
        %v1541 = vpop.permute.xlu0 %1540
        %v1546 = vadd.f32 %v1522, %v1535
        %v1547 = vadd.f32 %v1523, %v1537
        %v1548 = vadd.f32 %v1524, %v1539
        %v1549 = vadd.f32 %v1525, %v1541
        %v1550 = vmul.f32 %v1233, %v1257
        %v1551 = vmul.f32 %v1238, %v1262
        %v1552 = vmul.f32 %v1243, %v1267
        %v1553 = vmul.f32 %v1248, %v1272
        %v1554 = vmul.f32 %v1233, %v1280
        %v1555 = vmul.f32 %v1238, %v1284
        %v1556 = vmul.f32 %v1243, %v1288
        %v1557 = vmul.f32 %v1248, %v1292
        %1562 = vrot.lane.b32.xlu0 %v1554, 96
        %v1563 = vpop.permute.xlu0 %1562
        %1564 = vrot.lane.b32.xlu0 %v1555, 96
        %v1565 = vpop.permute.xlu0 %1564
        %1566 = vrot.lane.b32.xlu0 %v1556, 96
        %v1567 = vpop.permute.xlu0 %1566
        %1568 = vrot.lane.b32.xlu0 %v1557, 96
        %v1569 = vpop.permute.xlu0 %1568
        %v1574 = vadd.f32 %v1550, %v1563
        %v1575 = vadd.f32 %v1551, %v1565
        %v1576 = vadd.f32 %v1552, %v1567
        %v1577 = vadd.f32 %v1553, %v1569
        %v1578 = vmul.f32 %v1233, %v1320
        %v1579 = vmul.f32 %v1238, %v1324
        %v1580 = vmul.f32 %v1243, %v1328
        %v1581 = vmul.f32 %v1248, %v1332
        %1586 = vrot.lane.b32.xlu0 %v1578, 64
        %v1587 = vpop.permute.xlu0 %1586
        %1588 = vrot.lane.b32.xlu0 %v1579, 64
        %v1589 = vpop.permute.xlu0 %1588
        %1590 = vrot.lane.b32.xlu0 %v1580, 64
        %v1591 = vpop.permute.xlu0 %1590
        %1592 = vrot.lane.b32.xlu0 %v1581, 64
        %v1593 = vpop.permute.xlu0 %1592
        %v1598 = vadd.f32 %v1574, %v1587
        %v1599 = vadd.f32 %v1575, %v1589
        %v1600 = vadd.f32 %v1576, %v1591
        %v1601 = vadd.f32 %v1577, %v1593
        %v1602 = vmul.f32 %v1233, %v1360
        %v1603 = vmul.f32 %v1238, %v1364
        %v1604 = vmul.f32 %v1243, %v1368
        %v1605 = vmul.f32 %v1248, %v1372
        %1610 = vrot.lane.b32.xlu0 %v1602, 32
        %v1611 = vpop.permute.xlu0 %1610
        %1612 = vrot.lane.b32.xlu0 %v1603, 32
        %v1613 = vpop.permute.xlu0 %1612
        %1614 = vrot.lane.b32.xlu0 %v1604, 32
        %v1615 = vpop.permute.xlu0 %1614
        %1616 = vrot.lane.b32.xlu0 %v1605, 32
        %v1617 = vpop.permute.xlu0 %1616
        %v1622 = vadd.f32 %v1598, %v1611
        %v1623 = vadd.f32 %v1599, %v1613
        %v1624 = vadd.f32 %v1600, %v1615
        %v1625 = vadd.f32 %v1601, %v1617
        %1630 = vrot.lane.b32.xlu0 %v1470, 32
        %v1631 = vpop.permute.xlu0 %1630
        %1632 = vrot.lane.b32.xlu0 %v1471, 32
        %v1633 = vpop.permute.xlu0 %1632
        %1634 = vrot.lane.b32.xlu0 %v1472, 32
        %v1635 = vpop.permute.xlu0 %1634
        %1636 = vrot.lane.b32.xlu0 %v1473, 32
        %v1637 = vpop.permute.xlu0 %1636
        %1646 = vrot.lane.b32.xlu0 %v1546, 64
        %v1647 = vpop.permute.xlu0 %1646
        %1648 = vrot.lane.b32.xlu0 %v1547, 64
        %v1649 = vpop.permute.xlu0 %1648
        %1650 = vrot.lane.b32.xlu0 %v1548, 64
        %v1651 = vpop.permute.xlu0 %1650
        %1652 = vrot.lane.b32.xlu0 %v1549, 64
        %v1653 = vpop.permute.xlu0 %1652
        %1662 = vrot.lane.b32.xlu0 %v1622, 96
        %v1663 = vpop.permute.xlu0 %1662
        %1664 = vrot.lane.b32.xlu0 %v1623, 96
        %v1665 = vpop.permute.xlu0 %1664
        %1666 = vrot.lane.b32.xlu0 %v1624, 96
        %v1667 = vpop.permute.xlu0 %1666
        %1668 = vrot.lane.b32.xlu0 %v1625, 96
        %v1669 = vpop.permute.xlu0 %1668
        %vm1674 = vcmask 261120
        %v1675 = vsel %vm1674, %v1394, %v1631
        %v1676 = vsel %vm1674, %v1395, %v1633
        %v1677 = vsel %vm1674, %v1396, %v1635
        %v1678 = vsel %vm1674, %v1397, %v1637
        %vm1679 = vcmask 523264
        %v1680 = vsel %vm1679, %v1675, %v1647
        %v1681 = vsel %vm1679, %v1676, %v1649
        %v1682 = vsel %vm1679, %v1677, %v1651
        %v1683 = vsel %vm1679, %v1678, %v1653
        %vm1684 = vcmask 785408
        %v1685 = vsel %vm1684, %v1680, %v1663
        %v1686 = vsel %vm1684, %v1681, %v1665
        %v1687 = vsel %vm1684, %v1682, %v1667
        %v1688 = vsel %vm1684, %v1683, %v1669
        %v1690 = vsel %vm1674, %v271, 0
        %1692 = vmatprep.subr.mxu0 0.0
        %1693 = vmatpush1.msra.mxu0 %v1685
        %1694 = vmatprep.subr.mxu0 0.0
        %1695 = vmatpush1.msra.mxu0 %v1686
        %1696 = vmatprep.subr.mxu0 0.0
        %1697 = vmatpush1.msra.mxu0 %v1687
        %1698 = vmatprep.subr.mxu0 0.0
        %1699 = vmatpush1.msra.mxu0 %v1688
        %1700 = vmatprep.subr.mxu0 0.0
        %1701 = vmatpush1.msra.mxu0 0.0
        %1702 = vmatprep.subr.mxu0 0.0
        %1703 = vmatpush1.msra.mxu0 0.0
        %1704 = vmatprep.subr.mxu0 0.0
        %1705 = vmatpush1.msra.mxu0 0.0
        %1706 = vmatprep.subr.mxu0 0.0
        %1707 = vmatpush1.msra.mxu0 0.0
        %1708 = vmatprep.subr.mxu0 0.0
        %1709 = vmatpush1.msra.mxu0 0.0
        %1710 = vmatprep.subr.mxu0 0.0
        %1711 = vmatpush1.msra.mxu0 0.0
        %1712 = vmatprep.subr.mxu0 0.0
        %1713 = vmatpush1.msra.mxu0 0.0
        %1714 = vmatprep.subr.mxu0 0.0
        %1715 = vmatpush1.msra.mxu0 0.0
        %1716 = vmatprep.subr.mxu0 0.0
        %1717 = vmatpush1.msra.mxu0 0.0
        %1718 = vmatprep.subr.mxu0 0.0
        %1719 = vmatpush1.msra.mxu0 0.0
        %1720 = vmatprep.subr.mxu0 0.0
        %1721 = vmatpush1.msra.mxu0 0.0
        %1722 = vmatprep.subr.mxu0 0.0
        %1723 = vmatpush1.msra.mxu0 0.0
        %1724 = vmatprep.subr.mxu0 0.0
        %1725 = vmatpush1.msra.mxu0 0.0
        %1726 = vmatprep.subr.mxu0 0.0
        %1727 = vmatpush1.msra.mxu0 0.0
        %1728 = vmatprep.subr.mxu0 0.0
        %1729 = vmatpush1.msra.mxu0 0.0
        %1730 = vmatprep.subr.mxu0 0.0
        %1731 = vmatpush1.msra.mxu0 0.0
        %1732 = vmatprep.subr.mxu0 0.0
        %1733 = vmatpush1.msra.mxu0 0.0
        %1734 = vmatprep.subr.mxu0 0.0
        %1735 = vmatpush1.msra.mxu0 0.0
        %1736 = vmatprep.subr.mxu0 0.0
        %1737 = vmatpush1.msra.mxu0 0.0
        %1738 = vmatprep.subr.mxu0 0.0
        %1739 = vmatpush1.msra.mxu0 0.0
        %1740 = vmatprep.subr.mxu0 0.0
        %1741 = vmatpush1.msra.mxu0 0.0
        %1742 = vmatprep.subr.mxu0 0.0
        %1743 = vmatpush1.msra.mxu0 0.0
        %1744 = vmatprep.subr.mxu0 0.0
        %1745 = vmatpush1.msra.mxu0 0.0
        %1746 = vmatprep.subr.mxu0 0.0
        %1747 = vmatpush1.msra.mxu0 0.0
        %1748 = vmatprep.subr.mxu0 0.0
        %1749 = vmatpush1.msra.mxu0 0.0
        %1750 = vmatprep.subr.mxu0 0.0
        %1751 = vmatpush1.msra.mxu0 0.0
        %1752 = vmatprep.subr.mxu0 0.0
        %1753 = vmatpush1.msra.mxu0 0.0
        %1754 = vmatprep.subr.mxu0 0.0
        %1755 = vmatpush1.msra.mxu0 0.0
        %1756 = vmatprep.mubr.f32.mxu0 0.0
        %1757 = vmatmul.mubr.f32.gmra.mrb[0].mxu0 %v1690
        %v1758 = vpop.f32.mrb[0].mxu0
        %v1759 = vadd.f32 %v233, %v1758
        %v1760 = vpop.f32.mrb[0].mxu0
        %1761 = vdwg.mxu0
        %v1762 = vsel %vm1674, %v1759, 0.0
        %1763 = vadd.xlane.f32.xlu0 %v1762
        %v1764 = vpop.xlane.xlu0 %1763
        %v1765 = vrcp.pop 32.0
        %v1766 = vmul.f32 %v1764, %v1765
        %v1767 = vsub.f32 %v1759, %v1766
        %v1768 = vmul.f32 %v1767, %v1767
        %v1769 = vsel %vm1674, %v1768, 0.0
        %1770 = vadd.xlane.f32.xlu0 %v1769
        %v1771 = vpop.xlane.xlu0 %1770
        %v1772 = vmul.f32 %v1771, %v1765
        %v1773 = vadd.f32 %v1772, 1e-05
        %v1774 = vrsqrt.pop %v1773
        %v1775 = vmul.f32 %v1767, %v1774
        %1777 = vrot.lane.b32.xlu0 %v1759, 96
        %v1778 = vpop.permute.xlu0 %1777
        %v1780 = vsel %vm1674, %v1778, 0.0
        %1781 = vadd.xlane.f32.xlu0 %v1780
        %v1782 = vpop.xlane.xlu0 %1781
        %v1783 = vmul.f32 %v1782, %v1765
        %v1784 = vsub.f32 %v1759, %v1783
        %v1785 = vmul.f32 %v1784, %v1784
        %1787 = vrot.lane.b32.xlu0 %v1785, 96
        %v1788 = vpop.permute.xlu0 %1787
        %v1790 = vsel %vm1674, %v1788, 0.0
        %1791 = vadd.xlane.f32.xlu0 %v1790
        %v1792 = vpop.xlane.xlu0 %1791
        %v1793 = vmul.f32 %v1792, %v1765
        %v1794 = vadd.f32 %v1793, 1e-05
        %v1795 = vrsqrt.pop %v1794
        %v1796 = vmul.f32 %v1784, %v1795
        %1797 = vrot.lane.b32.xlu0 %v1759, 64
        %v1798 = vpop.permute.xlu0 %1797
        %v1800 = vsel %vm1674, %v1798, 0.0
        %1801 = vadd.xlane.f32.xlu0 %v1800
        %v1802 = vpop.xlane.xlu0 %1801
        %v1803 = vmul.f32 %v1802, %v1765
        %v1804 = vsub.f32 %v1759, %v1803
        %v1805 = vmul.f32 %v1804, %v1804
        %1807 = vrot.lane.b32.xlu0 %v1805, 64
        %v1808 = vpop.permute.xlu0 %1807
        %v1810 = vsel %vm1674, %v1808, 0.0
        %1811 = vadd.xlane.f32.xlu0 %v1810
        %v1812 = vpop.xlane.xlu0 %1811
        %v1813 = vmul.f32 %v1812, %v1765
        %v1814 = vadd.f32 %v1813, 1e-05
        %v1815 = vrsqrt.pop %v1814
        %v1816 = vmul.f32 %v1804, %v1815
        %1817 = vrot.lane.b32.xlu0 %v1759, 32
        %v1818 = vpop.permute.xlu0 %1817
        %v1820 = vsel %vm1674, %v1818, 0.0
        %1821 = vadd.xlane.f32.xlu0 %v1820
        %v1822 = vpop.xlane.xlu0 %1821
        %v1823 = vmul.f32 %v1822, %v1765
        %v1824 = vsub.f32 %v1759, %v1823
        %v1825 = vmul.f32 %v1824, %v1824
        %1827 = vrot.lane.b32.xlu0 %v1825, 32
        %v1828 = vpop.permute.xlu0 %1827
        %v1830 = vsel %vm1674, %v1828, 0.0
        %1831 = vadd.xlane.f32.xlu0 %v1830
        %v1832 = vpop.xlane.xlu0 %1831
        %v1833 = vmul.f32 %v1832, %v1765
        %v1834 = vadd.f32 %v1833, 1e-05
        %v1835 = vrsqrt.pop %v1834
        %v1836 = vmul.f32 %v1824, %v1835
        %v1837 = vsel %vm1674, %v1775, %v1796
        %v1838 = vsel %vm1679, %v1837, %v1816
        %v1839 = vsel %vm1684, %v1838, %v1836
        %v1840 = vlaneseq
        %v1841 = vshrl.u32 %v1840, 7
        %v1842 = vsub.s32 0, %v1841
        %v1843 = vrot.slane %v266, %v1842
        %v1844 = vmul.f32 %v1839, %v1843
        %v1845 = vlaneseq
        %v1846 = vshrl.u32 %v1845, 7
        %v1847 = vsub.s32 0, %v1846
        %v1848 = vrot.slane %v267, %v1847
        %v1849 = vadd.f32 %v1844, %v1848
        %v1850 = vlaneseq
        %v1851 = vshrl.u32 %v1850, 7
        %v1852 = vsub.s32 0, %v1851
        %v1853 = vrot.slane %v270, %v1852
        %1854 = vmatprep.subr.mxu0 0.0
        %1855 = vmatpush1.msra.mxu0 %v234
        %1856 = vmatprep.subr.mxu0 0.0
        %1857 = vmatpush1.msra.mxu0 %v235
        %1858 = vmatprep.subr.mxu0 0.0
        %1859 = vmatpush1.msra.mxu0 %v236
        %1860 = vmatprep.subr.mxu0 0.0
        %1861 = vmatpush1.msra.mxu0 %v237
        %1862 = vmatprep.subr.mxu0 0.0
        %1863 = vmatpush1.msra.mxu0 %v238
        %1864 = vmatprep.subr.mxu0 0.0
        %1865 = vmatpush1.msra.mxu0 %v239
        %1866 = vmatprep.subr.mxu0 0.0
        %1867 = vmatpush1.msra.mxu0 %v240
        %1868 = vmatprep.subr.mxu0 0.0
        %1869 = vmatpush1.msra.mxu0 %v241
        %1870 = vmatprep.subr.mxu0 0.0
        %1871 = vmatpush1.msra.mxu0 %v242
        %1872 = vmatprep.subr.mxu0 0.0
        %1873 = vmatpush1.msra.mxu0 %v243
        %1874 = vmatprep.subr.mxu0 0.0
        %1875 = vmatpush1.msra.mxu0 %v244
        %1876 = vmatprep.subr.mxu0 0.0
        %1877 = vmatpush1.msra.mxu0 %v245
        %1878 = vmatprep.subr.mxu0 0.0
        %1879 = vmatpush1.msra.mxu0 %v246
        %1880 = vmatprep.subr.mxu0 0.0
        %1881 = vmatpush1.msra.mxu0 %v247
        %1882 = vmatprep.subr.mxu0 0.0
        %1883 = vmatpush1.msra.mxu0 %v248
        %1884 = vmatprep.subr.mxu0 0.0
        %1885 = vmatpush1.msra.mxu0 %v249
        %1886 = vmatprep.subr.mxu0 0.0
        %1887 = vmatpush1.msra.mxu0 0.0
        %1888 = vmatprep.subr.mxu0 0.0
        %1889 = vmatpush1.msra.mxu0 0.0
        %1890 = vmatprep.subr.mxu0 0.0
        %1891 = vmatpush1.msra.mxu0 0.0
        %1892 = vmatprep.subr.mxu0 0.0
        %1893 = vmatpush1.msra.mxu0 0.0
        %1894 = vmatprep.subr.mxu0 0.0
        %1895 = vmatpush1.msra.mxu0 0.0
        %1896 = vmatprep.subr.mxu0 0.0
        %1897 = vmatpush1.msra.mxu0 0.0
        %1898 = vmatprep.subr.mxu0 0.0
        %1899 = vmatpush1.msra.mxu0 0.0
        %1900 = vmatprep.subr.mxu0 0.0
        %1901 = vmatpush1.msra.mxu0 0.0
        %1902 = vmatprep.subr.mxu0 0.0
        %1903 = vmatpush1.msra.mxu0 0.0
        %1904 = vmatprep.subr.mxu0 0.0
        %1905 = vmatpush1.msra.mxu0 0.0
        %1906 = vmatprep.subr.mxu0 0.0
        %1907 = vmatpush1.msra.mxu0 0.0
        %1908 = vmatprep.subr.mxu0 0.0
        %1909 = vmatpush1.msra.mxu0 0.0
        %1910 = vmatprep.subr.mxu0 0.0
        %1911 = vmatpush1.msra.mxu0 0.0
        %1912 = vmatprep.subr.mxu0 0.0
        %1913 = vmatpush1.msra.mxu0 0.0
        %1914 = vmatprep.subr.mxu0 0.0
        %1915 = vmatpush1.msra.mxu0 0.0
        %1916 = vmatprep.subr.mxu0 0.0
        %1917 = vmatpush1.msra.mxu0 0.0
        %1918 = vmatprep.mubr.f32.mxu0 0.0
        %1919 = vmatmul.mubr.f32.gmra.mrb[0].mxu0 %v1849
        %v1920 = vpop.f32.mrb[0].mxu0
        %v1921 = vadd.f32 %v1853, %v1920
        %v1922 = vpop.f32.mrb[0].mxu0
        %1923 = vdwg.mxu0
        %v1924 = vadd.f32 %v1921, %v1849
        %v1925 = vsel %vm1674, %v1924, 0.0
        %1926 = vadd.xlane.f32.xlu0 %v1925
        %v1927 = vpop.xlane.xlu0 %1926
        %v1928 = vmul.f32 %v1927, %v1765
        %v1929 = vsub.f32 %v1924, %v1928
        %v1930 = vmul.f32 %v1929, %v1929
        %v1931 = vsel %vm1674, %v1930, 0.0
        %1932 = vadd.xlane.f32.xlu0 %v1931
        %v1933 = vpop.xlane.xlu0 %1932
        %v1934 = vmul.f32 %v1933, %v1765
        %v1935 = vadd.f32 %v1934, 1e-05
        %v1936 = vrsqrt.pop %v1935
        %v1937 = vmul.f32 %v1929, %v1936
        %1939 = vrot.lane.b32.xlu0 %v1924, 96
        %v1940 = vpop.permute.xlu0 %1939
        %v1942 = vsel %vm1674, %v1940, 0.0
        %1943 = vadd.xlane.f32.xlu0 %v1942
        %v1944 = vpop.xlane.xlu0 %1943
        %v1945 = vmul.f32 %v1944, %v1765
        %v1946 = vsub.f32 %v1924, %v1945
        %v1947 = vmul.f32 %v1946, %v1946
        %1949 = vrot.lane.b32.xlu0 %v1947, 96
        %v1950 = vpop.permute.xlu0 %1949
        %v1952 = vsel %vm1674, %v1950, 0.0
        %1953 = vadd.xlane.f32.xlu0 %v1952
        %v1954 = vpop.xlane.xlu0 %1953
        %v1955 = vmul.f32 %v1954, %v1765
        %v1956 = vadd.f32 %v1955, 1e-05
        %v1957 = vrsqrt.pop %v1956
        %v1958 = vmul.f32 %v1946, %v1957
        %1959 = vrot.lane.b32.xlu0 %v1924, 64
        %v1960 = vpop.permute.xlu0 %1959
        %v1962 = vsel %vm1674, %v1960, 0.0
        %1963 = vadd.xlane.f32.xlu0 %v1962
        %v1964 = vpop.xlane.xlu0 %1963
        %v1965 = vmul.f32 %v1964, %v1765
        %v1966 = vsub.f32 %v1924, %v1965
        %v1967 = vmul.f32 %v1966, %v1966
        %1969 = vrot.lane.b32.xlu0 %v1967, 64
        %v1970 = vpop.permute.xlu0 %1969
        %v1972 = vsel %vm1674, %v1970, 0.0
        %1973 = vadd.xlane.f32.xlu0 %v1972
        %v1974 = vpop.xlane.xlu0 %1973
        %v1975 = vmul.f32 %v1974, %v1765
        %v1976 = vadd.f32 %v1975, 1e-05
        %v1977 = vrsqrt.pop %v1976
        %v1978 = vmul.f32 %v1966, %v1977
        %1979 = vrot.lane.b32.xlu0 %v1924, 32
        %v1980 = vpop.permute.xlu0 %1979
        %v1982 = vsel %vm1674, %v1980, 0.0
        %1983 = vadd.xlane.f32.xlu0 %v1982
        %v1984 = vpop.xlane.xlu0 %1983
        %v1985 = vmul.f32 %v1984, %v1765
        %v1986 = vsub.f32 %v1924, %v1985
        %v1987 = vmul.f32 %v1986, %v1986
        %1989 = vrot.lane.b32.xlu0 %v1987, 32
        %v1990 = vpop.permute.xlu0 %1989
        %v1992 = vsel %vm1674, %v1990, 0.0
        %1993 = vadd.xlane.f32.xlu0 %v1992
        %v1994 = vpop.xlane.xlu0 %1993
        %v1995 = vmul.f32 %v1994, %v1765
        %v1996 = vadd.f32 %v1995, 1e-05
        %v1997 = vrsqrt.pop %v1996
        %v1998 = vmul.f32 %v1986, %v1997
        %v1999 = vsel %vm1674, %v1937, %v1958
        %v2000 = vsel %vm1679, %v1999, %v1978
        %v2001 = vsel %vm1684, %v2000, %v1998
        %v2002 = vlaneseq
        %v2003 = vshrl.u32 %v2002, 7
        %v2004 = vsub.s32 0, %v2003
        %v2005 = vrot.slane %v268, %v2004
        %v2006 = vmul.f32 %v2001, %v2005
        %v2007 = vlaneseq
        %v2008 = vshrl.u32 %v2007, 7
        %v2009 = vsub.s32 0, %v2008
        %v2010 = vrot.slane %v269, %v2009
        %v2011 = vadd.f32 %v2006, %v2010
        %2012 = vst [vmem:[%s232] sm:$0xff] %v2011
        %p2013 = scmp.lt.s32.totalorder %s17, 3
        %s2014 = scalar_select %p2013, %s17, 3
        %s2015 = smul.addr %s2014, 8
        %s2016 = scalar_lea.vmem %s5, %s2015
        // Predicated region
        $region45: #{encoder_layer_two.1} parent=39 // pred_check
          %p2017 = pneg %p145
        $region46: #{encoder_layer_two.1} parent=39 // pred_check_branch
          %2019 = sbr.rel (%p2017) target = $region48
        $region47: #{encoder_layer_two.1} parent=39 // pred_region
          _
        $region48: #{encoder_layer_two.1} parent=39 // pred_fallthru
          _
      $region40: #{encoder_layer_two.1} parent=5 // pred_fallthru
        _
      %p2020 = scmp.le.s32.totalorder 2, %s12
      // Predicated region
      $region49: #{encoder_layer_two.1} parent=5 // pred_check
        %p2021 = pneg %p2020
      $region50: #{encoder_layer_two.1} parent=5 // pred_check_branch
        %2023 = sbr.rel (%p2021) target = $region52
      $region51: #{encoder_layer_two.1} parent=5 // pred_region
        %s2024 = ssub.s32 %s12, 2
        // Predicated region
        $region53: #{encoder_layer_two.1} parent=51 // pred_check
          %p2025 = pneg %p151
        $region54: #{encoder_layer_two.1} parent=51 // pred_check_branch
          %2027 = sbr.rel (%p2025) target = $region56
        $region55: #{encoder_layer_two.1} parent=51 // pred_region
          %p2028 = scmp.lt.s32.totalorder %s18, 3
          %s2029 = scalar_select %p2028, %s18, 3
          %s2030 = smul.addr %s2029, 8
          %s2031 = scalar_lea.vmem %s5, %s2030
        $region56: #{encoder_layer_two.1} parent=51 // pred_fallthru
          _
      $region52: #{encoder_layer_two.1} parent=5 // pred_fallthru
        _
    $region6: #{encoder_layer_two.1} parent=1 // loop_footer
      %s16 = sadd.s32 1, %s12
    $region7: #{encoder_layer_two.1} parent=1 // loop_footer_branch
      %11 = sbr.rel target = $region3
    $region8: #{encoder_layer_two.1} parent=1 // loop_exit
      _
    %2032 = vsyncpa [#allocation3], 1
    %s2033 = scalar_lea.sflag [#allocation3], 1
    %2034 = vsyncpa %s2033, 1

</llo_original>
